<compile_context>
chip_gen: v7x
topology: tpu7x:2x2x1
jax: 0.10.0
libtpu: 0.0.40
codegen_flags: <defaults>
</compile_context>

<pallas_src>
import math
import functools

import jax
import jax.numpy as jnp
from jax import lax
from jax.experimental import pallas as pl
from jax.experimental.pallas import tpu as pltpu


# ----------------------------------------------------------------------------
# VMEM budgeting (per TPU generation)
# ----------------------------------------------------------------------------
@functools.lru_cache(maxsize=1)
def _vmem_budget():
    """Returns (working_set_budget_bytes, vmem_limit_bytes)."""
    phys = 64 << 20  # conservative fallback (v7x per-TC physical VMEM)
    try:
        info = pltpu.get_tpu_info()
        phys = int(getattr(info, "vmem_capacity_bytes", phys))
    except Exception:
        pass
    budget = max(8 << 20, phys // 4)                     # v5e/v6e: 32 MiB, v7x: 16 MiB
    limit = max(budget, min(phys - (8 << 20), budget + (8 << 20)))
    return int(budget), int(limit)


# ----------------------------------------------------------------------------
# Fused: G = (V @ V.T / P) * exp(latent_Gscale)  AND  obj = -0.5*dof*(tr(G) - P)
# Row-tiled over a grid; trace accumulated in SMEM; obj is an SMEM scalar out.
# ----------------------------------------------------------------------------
def _g_obj_kernel(scale_ref, v_row_ref, v_full_ref, g_ref, obj_ref, tr_ref,
                  *, dof, P, tp):
    i = pl.program_id(0)

    @pl.when(i == 0)
    def _():
        tr_ref[0] = jnp.float32(0.0)

    vr = v_row_ref[...]
    # One scalar exp + one scalar mul, applied once to the MXU result
    # (instead of a per-element divide over P^2 elements).
    s = jnp.exp(scale_ref[0]) * jnp.float32(1.0 / P)
    # Contract on axis 1 of BOTH operands -> MXU consumes the transpose; no
    # explicit V.T (XLU transpose) or PxP VMEM temporary.
    g = lax.dot_general(
        vr, v_full_ref[...],
        dimension_numbers=(((1,), (1,)), ((), ())),
        preferred_element_type=jnp.float32,
    ) * s
    g_ref[...] = g

    # trace(G) = s * sum(V * V); mask padded rows of the last tile.
    row = i * tp + lax.broadcasted_iota(jnp.int32, (vr.shape[0], 1), 0)
    vr_valid = jnp.where(row < P, vr, jnp.float32(0.0))
    tr_ref[0] += s * jnp.sum(vr_valid * vr_valid)

    @pl.when(i == pl.num_programs(0) - 1)
    def _():
        obj_ref[0] = jnp.float32(-0.5 * dof) * (tr_ref[0] - jnp.float32(P))


def _choose_tp(P, budget_bytes):
    itemsize = 4
    if P <= 8:
        return P
    avail = budget_bytes - P * P * itemsize              # resident full V (RHS)
    tp = max(8, avail // max(1, 4 * P * itemsize))       # 2 bufs each: V rows, G rows
    tp = int(min(tp, P))
    if tp >= P:
        return P
    return max(8, (tp // 8) * 8)


def compute_G_and_obj(V, latent_Gscale, dof):
    P = V.shape[0]
    budget, vmem_limit = _vmem_budget()
    tp = _choose_tp(P, budget)
    grid = (pl.cdiv(P, tp),)
    Vf = V.astype(jnp.float32)

    # TODO(synk): for P large enough that the resident (P,P) V block alone exceeds
    # the VMEM budget (~2k at f32 on v7x), the RHS would also need K-tiling.
    g, obj = pl.pallas_call(
        functools.partial(_g_obj_kernel, dof=float(dof), P=P, tp=tp),
        out_shape=(
            jax.ShapeDtypeStruct((P, P), jnp.float32),
            jax.ShapeDtypeStruct((1,), jnp.float32),
        ),
        grid_spec=pltpu.PrefetchScalarGridSpec(
            num_scalar_prefetch=0,
            grid=grid,
            in_specs=[
                pl.BlockSpec(memory_space=pltpu.SMEM),        # scalar latent_Gscale
                pl.BlockSpec((tp, P), lambda i: (i, 0)),      # streamed V row tiles
                pl.BlockSpec((P, P), lambda i: (0, 0)),       # resident V (RHS)
            ],
            out_specs=(
                pl.BlockSpec((tp, P), lambda i: (i, 0)),      # G row tiles
                pl.BlockSpec(memory_space=pltpu.SMEM),        # obj scalar (SMEM)
            ),
            scratch_shapes=[pltpu.SMEM((1,), jnp.float32)],   # trace accumulator
        ),
        compiler_params=pltpu.CompilerParams(
            dimension_semantics=("arbitrary",),               # sequential trace accum
            vmem_limit_bytes=vmem_limit,
        ),
    )(latent_Gscale.reshape(1).astype(jnp.float32), Vf, Vf)
    return g, obj[0]


# ----------------------------------------------------------------------------
# Y = X @ L   (hot path: large lane-dense row tiles, L held resident in VMEM)
# ----------------------------------------------------------------------------
def _scale_kernel(x_ref, l_ref, y_ref):
    y_ref[...] = jnp.dot(
        x_ref[...], l_ref[...], preferred_element_type=jnp.float32
    ).astype(y_ref.dtype)


def _choose_tm(M, N, itemsize, budget_bytes, align):
    """Largest row tile keeping (double-buffered X + Y tiles) + resident L under
    the per-generation VMEM budget; >=2 grid steps when M is large enough so
    v7x's two TensorCores both get work; dtype-aware sublane alignment."""
    if M <= align:
        return M
    avail = budget_bytes - 2 * N * N * itemsize           # (double-buffered) L
    tm = max(align, avail // max(1, 4 * N * itemsize))    # 2 bufs each for X and Y
    tm = int(min(tm, 8192, M))
    if M >= 4 * align:                                    # keep >=2 grid steps
        half = ((M + 1) // 2 + align - 1) // align * align
        tm = min(tm, half)
    if tm >= M:
        return M
    return max(align, (tm // align) * align)


def _scaled_matmul(X, L):
    M, N = X.shape
    itemsize = jnp.dtype(X.dtype).itemsize
    align = {4: 8, 2: 16, 1: 32}.get(itemsize, 8)
    budget, vmem_limit = _vmem_budget()
    tm = _choose_tm(M, N, itemsize, budget, align)
    grid = (pl.cdiv(M, tm),)                              # remainder-safe last tile

    cost = pl.CostEstimate(
        flops=2 * M * N * N,
        transcendentals=0,
        bytes_accessed=itemsize * (2 * M * N + N * N),
    )

    return pl.pallas_call(
        _scale_kernel,
        out_shape=jax.ShapeDtypeStruct((M, N), X.dtype),
        grid_spec=pltpu.PrefetchScalarGridSpec(
            num_scalar_prefetch=0,
            grid=grid,
            in_specs=[
                pl.BlockSpec((tm, N), lambda i: (i, 0)),   # streamed X rows
                pl.BlockSpec((N, N), lambda i: (0, 0)),    # L resident across grid
            ],
            out_specs=pl.BlockSpec((tm, N), lambda i: (i, 0)),
        ),
        compiler_params=pltpu.CompilerParams(
            dimension_semantics=("parallel",),             # megacore-shardable (v7x)
            vmem_limit_bytes=vmem_limit,
        ),
        cost_estimate=cost,
    )(X, L.astype(X.dtype))


def feature_scale(X, L, *, compute_dtype=None):
    # NOTE: compute_dtype=bf16 downcasts L (the Cholesky factor) — opt-in only;
    # validate tolerance for ill-conditioned G before enabling.
    if compute_dtype is not None:
        X = X.astype(compute_dtype)
        L = L.astype(compute_dtype)
    else:
        L = L.astype(X.dtype)

    M, P = X.shape
    if P < 128 and (128 % P) == 0:
        # Lane-dense path for small P: pack r = 128/P rows per 128-lane row
        # (contiguous reshape, free) and multiply by block_diag(L,...,L).
        # Exactly equal to X @ L (extra products are exact zeros).
        r = 128 // P
        pad = (-M) % r
        Xp = jnp.pad(X, ((0, pad), (0, 0))) if pad else X
        Xp = Xp.reshape((M + pad) // r, 128)
        Lb = jnp.kron(jnp.eye(r, dtype=L.dtype), L)        # (128, 128) block-diag
        Yp = _scaled_matmul(Xp, Lb)
        Y = Yp.reshape(M + pad, P)
        return Y[:M] if pad else Y

    # TODO(synk): for P >= 128 that is not a multiple of 128, output stores are
    # lane-masked; pad P to a multiple of 128 upstream for full lane density.
    return _scaled_matmul(X, L)


# ----------------------------------------------------------------------------
# Whole forward as single jitted programs (G kernel + cholesky + scaling kernels)
# ----------------------------------------------------------------------------
def _g_l_obj(V, latent_Gscale, dof):
    G, obj = compute_G_and_obj(V, latent_Gscale, dof)
    # TODO(synk): Cholesky factorization has no clean Pallas equivalent; plain JAX.
    L = jnp.linalg.cholesky(G)                             # chol_sqrt(G), lower
    return G, L, obj


@functools.partial(jax.jit, static_argnames=("dof", "compute_dtype"))
def _forward_tuple(V, latent_Gscale, X, Xt, *, dof, compute_dtype):
    _, L, obj = _g_l_obj(V, latent_Gscale, dof)
    Y = feature_scale(X, L, compute_dtype=compute_dtype)
    Yt = feature_scale(Xt, L, compute_dtype=compute_dtype)
    return Y, Yt, obj


@functools.partial(jax.jit, static_argnames=("dof", "compute_dtype"))
def _forward_single(V, latent_Gscale, X, *, dof, compute_dtype):
    _, L, _ = _g_l_obj(V, latent_Gscale, dof)
    return feature_scale(X, L, compute_dtype=compute_dtype)


# ----------------------------------------------------------------------------
# Module-level wrapper mirroring FeatureScaling / Layer
# ----------------------------------------------------------------------------
class FeatureScaling:
    def __init__(self, N, dof, compute_dtype=None):
        self.P = N
        self.dof = float(dof)
        self.compute_dtype = compute_dtype  # e.g. jnp.bfloat16 (opt-in) to halve HBM traffic
        # Deterministic init exactly as the PyTorch module:
        self.V = jnp.eye(N, dtype=jnp.float32) * math.sqrt(N)
        self.latent_Gscale = jnp.zeros((), dtype=jnp.float32)
        self.computed_obj = None

    @property
    def G(self):
        G, _ = compute_G_and_obj(self.V, self.latent_Gscale, self.dof)
        return G

    def indiv_forward(self, X):
        return _forward_single(self.V, self.latent_Gscale, X,
                               dof=self.dof, compute_dtype=self.compute_dtype)

    def forward(self, Xs):
        if isinstance(Xs, tuple):
            X, Xt = Xs
            # One XLA program: G kernel + cholesky + both scaling kernels + obj.
            Y, Yt, obj = _forward_tuple(self.V, self.latent_Gscale, X, Xt,
                                        dof=self.dof,
                                        compute_dtype=self.compute_dtype)
            self.computed_obj = obj
            return (Y, Yt)
        return self.indiv_forward(Xs)

    def obj(self):
        return self.computed_obj


if __name__ == "__main__":
    key = jax.random.PRNGKey(0)
    kx, kxt, kodd = jax.random.split(key, 3)

    P = 32      # feature dim
    M = 128     # rows in X
    Mt = 64     # rows in Xt
    dof = 2.0

    X = jax.random.normal(kx, (M, P), dtype=jnp.float32)
    Xt = jax.random.normal(kxt, (Mt, P), dtype=jnp.float32)
    X_odd = jax.random.normal(kodd, (50, P), dtype=jnp.float32)  # exercises padding

    layer = FeatureScaling(P, dof)

    # tuple path (also computes the objective)
    Y, Yt = layer.forward((X, Xt))
    obj = layer.obj()
    jax.block_until_ready((Y, Yt, obj))

    # single-tensor paths
    Y_single = layer.forward(X)
    Y_odd = layer.forward(X_odd)
    jax.block_until_ready((Y_single, Y_odd))

    # reference check in plain JAX
    G_ref = (layer.V @ layer.V.T / P) * jnp.exp(layer.latent_Gscale)
    L_ref = jnp.linalg.cholesky(G_ref)
    assert jnp.allclose(Y, X @ L_ref, atol=1e-5, rtol=1e-5)
    assert jnp.allclose(Yt, Xt @ L_ref, atol=1e-5, rtol=1e-5)
    assert jnp.allclose(Y_single, X @ L_ref, atol=1e-5, rtol=1e-5)
    assert jnp.allclose(Y_odd, X_odd @ L_ref, atol=1e-5, rtol=1e-5)
    assert jnp.allclose(obj, -0.5 * dof * (jnp.trace(G_ref) - P), atol=1e-5)
    assert jnp.allclose(layer.G, G_ref, atol=1e-5, rtol=1e-5)

    print("KERNEL_OK")
</pallas_src>

<mosaic_0001>
module attributes {stable_mosaic.version = 11 : i64} {
  func.func @_g_obj_kernel(%arg0: i32, %arg1: memref<1xf32, #tpu.memory_space<smem>>, %arg2: memref<32x32xf32, #tpu.memory_space<vmem>>, %arg3: memref<32x32xf32, #tpu.memory_space<vmem>>, %arg4: memref<32x32xf32, #tpu.memory_space<vmem>>, %arg5: memref<1xf32, #tpu.memory_space<smem>>, %arg6: memref<1xf32, #tpu.memory_space<smem>>) attributes {dimension_semantics = [#tpu.dimension_semantics<arbitrary>], iteration_bounds = array<i64: 1>, scalar_prefetch = 0 : i64, scratch_operands = 1 : i64, tpu.core_type = #tpu.core_type<tc>, window_params = [{transform_indices = @transform_0, window_bounds = array<i64: 1>}, {transform_indices = @transform_1, window_bounds = array<i64: 32, 32>}, {pipeline_mode = #tpu.pipeline_mode<synchronous>, transform_indices = @transform_2, window_bounds = array<i64: 32, 32>}, {transform_indices = @transform_3, window_bounds = array<i64: 32, 32>}, {transform_indices = @transform_4, window_bounds = array<i64: 1>}]} {
    %c0_i32 = arith.constant 0 : i32
    %0 = arith.cmpi eq, %arg0, %c0_i32 : i32
    %1 = arith.extui %0 : i1 to i32
    %c0_i32_0 = arith.constant 0 : i32
    %2 = arith.cmpi ne, %1, %c0_i32_0 : i32
    scf.if %2 {
      %cst_15 = arith.constant 0.000000e+00 : f32
      %c0_16 = arith.constant 0 : index
      %34 = memref.load %arg6[%c0_16] : memref<1xf32, #tpu.memory_space<smem>>
      memref.store %cst_15, %arg6[%c0_16] : memref<1xf32, #tpu.memory_space<smem>>
    } else {
    }
    %c0 = arith.constant 0 : index
    %c0_1 = arith.constant 0 : index
    %3 = vector.load %arg2[%c0, %c0_1] : memref<32x32xf32, #tpu.memory_space<vmem>>, vector<32x32xf32>
    %c0_2 = arith.constant 0 : index
    %4 = memref.load %arg1[%c0_2] : memref<1xf32, #tpu.memory_space<smem>>
    %5 = math.exp %4 : f32
    %cst = arith.constant 3.125000e-02 : f32
    %6 = arith.mulf %5, %cst : f32
    %c0_3 = arith.constant 0 : index
    %c0_4 = arith.constant 0 : index
    %7 = vector.load %arg3[%c0_3, %c0_4] : memref<32x32xf32, #tpu.memory_space<vmem>>, vector<32x32xf32>
    %cst_5 = arith.constant dense<0.000000e+00> : vector<32x32xf32>
    %8 = tpu.matmul %3, %7, %cst_5 {dimension_numbers = #tpu.dot_dimension_numbers<[1], [1], [0], [0], [0, 0, 1, 0], [], []>} : vector<32x32xf32>, vector<32x32xf32>, vector<32x32xf32> -> vector<32x32xf32>
    %9 = vector.broadcast %6 : f32 to vector<32x32xf32>
    %10 = arith.mulf %8, %9 : vector<32x32xf32>
    %c0_6 = arith.constant 0 : index
    %c0_7 = arith.constant 0 : index
    %11 = vector.load %arg4[%c0_6, %c0_7] : memref<32x32xf32, #tpu.memory_space<vmem>>, vector<32x32xf32>
    tpu.vector_store %arg4[%c0_6, %c0_7], %10 {strides = array<i32>} : memref<32x32xf32, #tpu.memory_space<vmem>>, vector<32x32xf32>,
    %c32_i32 = arith.constant 32 : i32
    %12 = arith.muli %arg0, %c32_i32 : i32
    %13 = tpu.iota {dimensions = array<i32: 0>} : vector<32x1xi32>
    %14 = vector.broadcast %12 : i32 to vector<32x1xi32>
    %15 = arith.addi %14, %13 : vector<32x1xi32>
    %c32_i32_8 = arith.constant 32 : i32
    %16 = vector.broadcast %c32_i32_8 : i32 to vector<32x1xi32>
    %17 = arith.cmpi slt, %15, %16 : vector<32x1xi32>
    %cst_9 = arith.constant 0.000000e+00 : f32
    %18 = vector.shape_cast %17 : vector<32x1xi1> to vector<32x1xi1>
    %19 = vector.broadcast %18 : vector<32x1xi1> to vector<32x32xi1>
    %20 = vector.broadcast %cst_9 : f32 to vector<32x32xf32>
    %21 = arith.select %19, %3, %20 : vector<32x32xi1>, vector<32x32xf32>
    %c0_10 = arith.constant 0 : index
    %22 = memref.load %arg6[%c0_10] : memref<1xf32, #tpu.memory_space<smem>>
    %23 = arith.mulf %21, %21 : vector<32x32xf32>
    %24 = vector.shape_cast %23 : vector<32x32xf32> to vector<1x32x32xf32>
    %cst_11 = arith.constant dense<0.000000e+00> : vector<1xf32>
    %25 = vector.multi_reduction <add>, %24, %cst_11 [1, 2] : vector<1x32x32xf32> to vector<1xf32>
    %26 = vector.shape_cast %25 : vector<1xf32> to vector<1x1x1xf32>
    %27 = vector.extract %26[0, 0, 0] : f32 from vector<1x1x1xf32>
    %28 = arith.mulf %6, %27 : f32
    %29 = arith.addf %22, %28 : f32
    %c0_12 = arith.constant 0 : index
    %30 = memref.load %arg6[%c0_12] : memref<1xf32, #tpu.memory_space<smem>>
    memref.store %29, %arg6[%c0_12] : memref<1xf32, #tpu.memory_space<smem>>
    %c0_i32_13 = arith.constant 0 : i32
    %31 = arith.cmpi eq, %arg0, %c0_i32_13 : i32
    %32 = arith.extui %31 : i1 to i32
    %c0_i32_14 = arith.constant 0 : i32
    %33 = arith.cmpi ne, %32, %c0_i32_14 : i32
    scf.if %33 {
      %c0_15 = arith.constant 0 : index
      %34 = memref.load %arg6[%c0_15] : memref<1xf32, #tpu.memory_space<smem>>
      %cst_16 = arith.constant 3.200000e+01 : f32
      %35 = arith.subf %34, %cst_16 : f32
      %cst_17 = arith.constant -1.000000e+00 : f32
      %36 = arith.mulf %cst_17, %35 : f32
      %c0_18 = arith.constant 0 : index
      %37 = memref.load %arg5[%c0_18] : memref<1xf32, #tpu.memory_space<smem>>
      memref.store %36, %arg5[%c0_18] : memref<1xf32, #tpu.memory_space<smem>>
    } else {
    }
    return
  }
  func.func @transform_0(%arg0: i32) -> i32 {
    %c0_i32 = arith.constant 0 : i32
    %c0_i32_0 = arith.constant 0 : i32
    return %c0_i32 : i32
  }
  func.func @transform_1(%arg0: i32) -> (i32, i32) {
    %c0_i32 = arith.constant 0 : i32
    %c0_i32_0 = arith.constant 0 : i32
    return %arg0, %c0_i32 : i32, i32
  }
  func.func @transform_2(%arg0: i32) -> (i32, i32) {
    %c0_i32 = arith.constant 0 : i32
    %c0_i32_0 = arith.constant 0 : i32
    %c0_i32_1 = arith.constant 0 : i32
    return %c0_i32, %c0_i32_0 : i32, i32
  }
  func.func @transform_3(%arg0: i32) -> (i32, i32) {
    %c0_i32 = arith.constant 0 : i32
    %c0_i32_0 = arith.constant 0 : i32
    return %arg0, %c0_i32 : i32, i32
  }
  func.func @transform_4(%arg0: i32) -> i32 {
    %c0_i32 = arith.constant 0 : i32
    %c0_i32_0 = arith.constant 0 : i32
    return %c0_i32 : i32
  }
}

module attributes {stable_mosaic.version = 11 : i64} {
  func.func @_scale_kernel(%arg0: i32, %arg1: memref<16x128xf32, #tpu.memory_space<vmem>>, %arg2: memref<128x128xf32, #tpu.memory_space<vmem>>, %arg3: memref<16x128xf32, #tpu.memory_space<vmem>>) attributes {dimension_semantics = [#tpu.dimension_semantics<parallel>], iteration_bounds = array<i64: 2>, scalar_prefetch = 0 : i64, scratch_operands = 0 : i64, tpu.core_type = #tpu.core_type<tc>, window_params = [{transform_indices = @transform_0, window_bounds = array<i64: 16, 128>}, {pipeline_mode = #tpu.pipeline_mode<synchronous>, transform_indices = @transform_1, window_bounds = array<i64: 128, 128>}, {transform_indices = @transform_2, window_bounds = array<i64: 16, 128>}]} {
    %c0 = arith.constant 0 : index
    %c0_0 = arith.constant 0 : index
    %0 = vector.load %arg1[%c0, %c0_0] : memref<16x128xf32, #tpu.memory_space<vmem>>, vector<16x128xf32>
    %c0_1 = arith.constant 0 : index
    %c0_2 = arith.constant 0 : index
    %1 = vector.load %arg2[%c0_1, %c0_2] : memref<128x128xf32, #tpu.memory_space<vmem>>, vector<128x128xf32>
    %cst = arith.constant dense<0.000000e+00> : vector<16x128xf32>
    %2 = tpu.matmul %0, %1, %cst {dimension_numbers = #tpu.dot_dimension_numbers<[1], [0], [0], [1], [0, 0, 1, 1], [], []>} : vector<16x128xf32>, vector<128x128xf32>, vector<16x128xf32> -> vector<16x128xf32>
    %c0_3 = arith.constant 0 : index
    %c0_4 = arith.constant 0 : index
    %3 = vector.load %arg3[%c0_3, %c0_4] : memref<16x128xf32, #tpu.memory_space<vmem>>, vector<16x128xf32>
    tpu.vector_store %arg3[%c0_3, %c0_4], %2 {strides = array<i32>} : memref<16x128xf32, #tpu.memory_space<vmem>>, vector<16x128xf32>,
    return
  }
  func.func @transform_0(%arg0: i32) -> (i32, i32) {
    %c0_i32 = arith.constant 0 : i32
    %c0_i32_0 = arith.constant 0 : i32
    return %arg0, %c0_i32 : i32, i32
  }
  func.func @transform_1(%arg0: i32) -> (i32, i32) {
    %c0_i32 = arith.constant 0 : i32
    %c0_i32_0 = arith.constant 0 : i32
    %c0_i32_1 = arith.constant 0 : i32
    return %c0_i32, %c0_i32_0 : i32, i32
  }
  func.func @transform_2(%arg0: i32) -> (i32, i32) {
    %c0_i32 = arith.constant 0 : i32
    %c0_i32_0 = arith.constant 0 : i32
    return %arg0, %c0_i32 : i32, i32
  }
}

module attributes {stable_mosaic.version = 11 : i64} {
  func.func @_scale_kernel(%arg0: i32, %arg1: memref<16x128xf32, #tpu.memory_space<vmem>>, %arg2: memref<128x128xf32, #tpu.memory_space<vmem>>, %arg3: memref<16x128xf32, #tpu.memory_space<vmem>>) attributes {dimension_semantics = [#tpu.dimension_semantics<parallel>], iteration_bounds = array<i64: 1>, scalar_prefetch = 0 : i64, scratch_operands = 0 : i64, tpu.core_type = #tpu.core_type<tc>, window_params = [{transform_indices = @transform_0, window_bounds = array<i64: 16, 128>}, {pipeline_mode = #tpu.pipeline_mode<synchronous>, transform_indices = @transform_1, window_bounds = array<i64: 128, 128>}, {transform_indices = @transform_2, window_bounds = array<i64: 16, 128>}]} {
    %c0 = arith.constant 0 : index
    %c0_0 = arith.constant 0 : index
    %0 = vector.load %arg1[%c0, %c0_0] : memref<16x128xf32, #tpu.memory_space<vmem>>, vector<16x128xf32>
    %c0_1 = arith.constant 0 : index
    %c0_2 = arith.constant 0 : index
    %1 = vector.load %arg2[%c0_1, %c0_2] : memref<128x128xf32, #tpu.memory_space<vmem>>, vector<128x128xf32>
    %cst = arith.constant dense<0.000000e+00> : vector<16x128xf32>
    %2 = tpu.matmul %0, %1, %cst {dimension_numbers = #tpu.dot_dimension_numbers<[1], [0], [0], [1], [0, 0, 1, 1], [], []>} : vector<16x128xf32>, vector<128x128xf32>, vector<16x128xf32> -> vector<16x128xf32>
    %c0_3 = arith.constant 0 : index
    %c0_4 = arith.constant 0 : index
    %3 = vector.load %arg3[%c0_3, %c0_4] : memref<16x128xf32, #tpu.memory_space<vmem>>, vector<16x128xf32>
    tpu.vector_store %arg3[%c0_3, %c0_4], %2 {strides = array<i32>} : memref<16x128xf32, #tpu.memory_space<vmem>>, vector<16x128xf32>,
    return
  }
  func.func @transform_0(%arg0: i32) -> (i32, i32) {
    %c0_i32 = arith.constant 0 : i32
    %c0_i32_0 = arith.constant 0 : i32
    return %arg0, %c0_i32 : i32, i32
  }
  func.func @transform_1(%arg0: i32) -> (i32, i32) {
    %c0_i32 = arith.constant 0 : i32
    %c0_i32_0 = arith.constant 0 : i32
    %c0_i32_1 = arith.constant 0 : i32
    return %c0_i32, %c0_i32_0 : i32, i32
  }
  func.func @transform_2(%arg0: i32) -> (i32, i32) {
    %c0_i32 = arith.constant 0 : i32
    %c0_i32_0 = arith.constant 0 : i32
    return %arg0, %c0_i32 : i32, i32
  }
}

</mosaic_0001>

<llo_original>
// kernel: custom-call.2
$region0: #{custom-call.2}
  %s0 = inlined_call_operand.vmem [shape: f32[32,32], index: 0, kind: input, shape index: {}]
  %s1 = inlined_call_operand.vmem [shape: f32[32,32], index: 1, kind: output, shape index: {}]
  $region1: #{custom-call.2} parent=0
    #allocation0 [shape = 'u8[16384]{0}', space=vmem, size = 0x4000, scoped, tag = 'operand span for operand 0']
    #allocation1 [shape = 'u8[16384]{0}', space=vmem, size = 0x4000, scoped, tag = 'operand span for operand 1']
    // Predicated region
    $region2: #{custom-call.2} parent=1 // pred_check
      _
    $region3: #{custom-call.2} parent=1 // pred_check_branch
      %3 = sbr.rel (0) target = $region5
    $region4: #{custom-call.2} parent=1 // pred_region
      // Predicated region
      $region6: #{custom-call.2} parent=4 // pred_check
        _
      $region7: #{custom-call.2} parent=4 // pred_check_branch
        %5 = sbr.rel (0) target = $region9
      $region8: #{custom-call.2} parent=4 // pred_region
        // Predicated region
        $region21: #{custom-call.2} parent=8 // pred_check
          _
        $region22: #{custom-call.2} parent=8 // pred_check_branch
          %26 = sbr.rel (0) target = $region24
        $region23: #{custom-call.2} parent=8 // pred_region
          loop: start=0, step=1, limit=1
          $region25: #{custom-call.2} parent=23 // loop_pre_header
            _
          $region26: #{custom-call.2} parent=23 // loop_header
            %s28 = sphi 0, %s32
            %p29 = scmp.ge.s32.totalorder %s28, 1
            %s33 = sphi %s0, %s0
            %s34 = sphi [#allocation0], [#allocation0]
          $region27: #{custom-call.2} parent=23 // loop_header_branch
            %31 = sbr.rel (%p29) target = $region31
          $region28: #{custom-call.2} parent=23 // loop_body
            %v35 = vld [vmem:[%s33] sm:$0xff]
            %36 = vst [vmem:[%s34] sm:$0xff] %v35
            %v37 = vld [vmem:[%s33 + $0x8] sm:$0xff]
            %38 = vst [vmem:[%s34 + $0x8] sm:$0xff] %v37
            %v39 = vld [vmem:[%s33 + $0x10] sm:$0xff]
            %40 = vst [vmem:[%s34 + $0x10] sm:$0xff] %v39
            %v41 = vld [vmem:[%s33 + $0x18] sm:$0xff]
            %42 = vst [vmem:[%s34 + $0x18] sm:$0xff] %v41
          $region29: #{custom-call.2} parent=23 // loop_footer
            %s32 = sadd.s32 1, %s28
          $region30: #{custom-call.2} parent=23 // loop_footer_branch
            %27 = sbr.rel target = $region26
          $region31: #{custom-call.2} parent=23 // loop_exit
            _
        $region24: #{custom-call.2} parent=8 // pred_fallthru
          _
        // Predicated region
        $region32: #{custom-call.2} parent=8 // pred_check
          _
        $region33: #{custom-call.2} parent=8 // pred_check_branch
          %44 = sbr.rel target = $region35
        $region34: #{custom-call.2} parent=8 // pred_region
          _
        $region35: #{custom-call.2} parent=8 // pred_fallthru
          _
      $region9: #{custom-call.2} parent=4 // pred_fallthru
        _
      // Predicated region
      $region10: #{custom-call.2} parent=4 // pred_check
        _
      $region11: #{custom-call.2} parent=4 // pred_check_branch
        %7 = sbr.rel target = $region13
      $region12: #{custom-call.2} parent=4 // pred_region
        loop: start=0, step=1, limit=1
        $region14: #{custom-call.2} parent=12 // loop_pre_header
          _
        $region15: #{custom-call.2} parent=12 // loop_header
          %s10 = sphi 0, %s14
          %p11 = scmp.ge.s32.totalorder %s10, 1
          %s15 = sphi %s0, %s0
          %s16 = sphi [#allocation0], [#allocation0]
        $region16: #{custom-call.2} parent=12 // loop_header_branch
          %13 = sbr.rel (%p11) target = $region20
        $region17: #{custom-call.2} parent=12 // loop_body
          %v17 = vld [vmem:[%s15] sm:$0xff]
          %18 = vst [vmem:[%s16] sm:$0xff] %v17
          %v19 = vld [vmem:[%s15 + $0x8] sm:$0xff]
          %20 = vst [vmem:[%s16 + $0x8] sm:$0xff] %v19
          %v21 = vld [vmem:[%s15 + $0x10] sm:$0xff]
          %22 = vst [vmem:[%s16 + $0x10] sm:$0xff] %v21
          %v23 = vld [vmem:[%s15 + $0x18] sm:$0xff]
          %24 = vst [vmem:[%s16 + $0x18] sm:$0xff] %v23
        $region18: #{custom-call.2} parent=12 // loop_footer
          %s14 = sadd.s32 1, %s10
        $region19: #{custom-call.2} parent=12 // loop_footer_branch
          %9 = sbr.rel target = $region15
        $region20: #{custom-call.2} parent=12 // loop_exit
          _
      $region13: #{custom-call.2} parent=4 // pred_fallthru
        _
    $region5: #{custom-call.2} parent=1 // pred_fallthru
      _
    %45 = vnop
    %46 = vst [vmem:[#allocation1] sm:$0xff] 0.0
    %s47 = scalar_lea.vmem [#allocation1], 8
    %48 = vst [vmem:[%s47] sm:$0xff] 0.0
    %s49 = scalar_lea.vmem [#allocation1], 16
    %50 = vst [vmem:[%s49] sm:$0xff] 0.0
    %s51 = scalar_lea.vmem [#allocation1], 24
    %52 = vst [vmem:[%s51] sm:$0xff] 0.0
    %vm53 = vcmask 7168
    %v54 = vld [vmem:[#allocation1] ss:$0 sm:$0xff]
    %v55 = vld [vmem:[#allocation0] ss:$0 sm:$0xff]
    %v56 = vmul.f32 %v54, %v54
    %57 = vadd.xlane.f32.xlu0 %v56
    %v58 = vpop.xlane.xlu0 %57
    %v59 = vsub.f32 %v55, %v58
    %v60 = vrsqrt.pop %v59
    %v61 = vld [vmem:[#allocation0] sm:$0xff]
    %v62 = vld [vmem:[#allocation1] sm:$0xff]
    %v63 = vmul.f32 %v62, %v54
    %64 = vadd.xlane.f32.xlu0 %v63
    %v65 = vpop.xlane.xlu0 %64
    %v66 = vsub.f32 %v61, %v65
    %v67 = vmul.f32 %v66, %v60
    %v68 = vsel %vm53, %v67, 0.0
    %v69 = vadd.f32 %v62, %v68
    %70 = vst [vmem:[#allocation1] sm:$0xff] %v69
    %s71 = scalar_lea.vmem [#allocation0], 8
    %v72 = vld [vmem:[%s71] sm:$0xff]
    %s73 = scalar_lea.vmem [#allocation1], 8
    %v74 = vld [vmem:[%s73] sm:$0xff]
    %v75 = vmul.f32 %v74, %v54
    %76 = vadd.xlane.f32.xlu0 %v75
    %v77 = vpop.xlane.xlu0 %76
    %v78 = vsub.f32 %v72, %v77
    %v79 = vmul.f32 %v78, %v60
    %v80 = vsel %vm53, %v79, 0.0
    %v81 = vadd.f32 %v74, %v80
    %s82 = scalar_lea.vmem [#allocation1], 8
    %83 = vst [vmem:[%s82] sm:$0xff] %v81
    %s84 = scalar_lea.vmem [#allocation0], 16
    %v85 = vld [vmem:[%s84] sm:$0xff]
    %s86 = scalar_lea.vmem [#allocation1], 16
    %v87 = vld [vmem:[%s86] sm:$0xff]
    %v88 = vmul.f32 %v87, %v54
    %89 = vadd.xlane.f32.xlu0 %v88
    %v90 = vpop.xlane.xlu0 %89
    %v91 = vsub.f32 %v85, %v90
    %v92 = vmul.f32 %v91, %v60
    %v93 = vsel %vm53, %v92, 0.0
    %v94 = vadd.f32 %v87, %v93
    %s95 = scalar_lea.vmem [#allocation1], 16
    %96 = vst [vmem:[%s95] sm:$0xff] %v94
    %s97 = scalar_lea.vmem [#allocation0], 24
    %v98 = vld [vmem:[%s97] sm:$0xff]
    %s99 = scalar_lea.vmem [#allocation1], 24
    %v100 = vld [vmem:[%s99] sm:$0xff]
    %v101 = vmul.f32 %v100, %v54
    %102 = vadd.xlane.f32.xlu0 %v101
    %v103 = vpop.xlane.xlu0 %102
    %v104 = vsub.f32 %v98, %v103
    %v105 = vmul.f32 %v104, %v60
    %v106 = vsel %vm53, %v105, 0.0
    %v107 = vadd.f32 %v100, %v106
    %s108 = scalar_lea.vmem [#allocation1], 24
    %109 = vst [vmem:[%s108] sm:$0xff] %v107
    %vm110 = vcmask 15368
    %s111 = scalar_lea.vmem [#allocation1], 1
    %v112 = vld [vmem:[%s111] ss:$0 sm:$0xff]
    %s113 = scalar_lea.vmem [#allocation0], 1
    %v114 = vld [vmem:[%s113] ss:$0 sm:$0xff]
    %v115 = vmul.f32 %v112, %v112
    %116 = vadd.xlane.f32.xlu0 %v115
    %v117 = vpop.xlane.xlu0 %116
    %v118 = vsub.f32 %v114, %v117
    %v119 = vrsqrt.pop %v118
    %v120 = vld [vmem:[#allocation0] sm:$0xff]
    %v121 = vld [vmem:[#allocation1] sm:$0xff]
    %v122 = vmul.f32 %v121, %v112
    %123 = vadd.xlane.f32.xlu0 %v122
    %v124 = vpop.xlane.xlu0 %123
    %v125 = vsub.f32 %v120, %v124
    %v126 = vmul.f32 %v125, %v119
    %vm127 = vcmask 1047553
    %vm128 = vmand %vm110, %vm127
    %v129 = vsel %vm128, %v126, 0.0
    %v130 = vadd.f32 %v121, %v129
    %131 = vst [vmem:[#allocation1] sm:$0xff] %v130
    %s132 = scalar_lea.vmem [#allocation0], 8
    %v133 = vld [vmem:[%s132] sm:$0xff]
    %s134 = scalar_lea.vmem [#allocation1], 8
    %v135 = vld [vmem:[%s134] sm:$0xff]
    %v136 = vmul.f32 %v135, %v112
    %137 = vadd.xlane.f32.xlu0 %v136
    %v138 = vpop.xlane.xlu0 %137
    %v139 = vsub.f32 %v133, %v138
    %v140 = vmul.f32 %v139, %v119
    %v141 = vsel %vm110, %v140, 0.0
    %v142 = vadd.f32 %v135, %v141
    %s143 = scalar_lea.vmem [#allocation1], 8
    %144 = vst [vmem:[%s143] sm:$0xff] %v142
    %s145 = scalar_lea.vmem [#allocation0], 16
    %v146 = vld [vmem:[%s145] sm:$0xff]
    %s147 = scalar_lea.vmem [#allocation1], 16
    %v148 = vld [vmem:[%s147] sm:$0xff]
    %v149 = vmul.f32 %v148, %v112
    %150 = vadd.xlane.f32.xlu0 %v149
    %v151 = vpop.xlane.xlu0 %150
    %v152 = vsub.f32 %v146, %v151
    %v153 = vmul.f32 %v152, %v119
    %v154 = vsel %vm110, %v153, 0.0
    %v155 = vadd.f32 %v148, %v154
    %s156 = scalar_lea.vmem [#allocation1], 16
    %157 = vst [vmem:[%s156] sm:$0xff] %v155
    %s158 = scalar_lea.vmem [#allocation0], 24
    %v159 = vld [vmem:[%s158] sm:$0xff]
    %s160 = scalar_lea.vmem [#allocation1], 24
    %v161 = vld [vmem:[%s160] sm:$0xff]
    %v162 = vmul.f32 %v161, %v112
    %163 = vadd.xlane.f32.xlu0 %v162
    %v164 = vpop.xlane.xlu0 %163
    %v165 = vsub.f32 %v159, %v164
    %v166 = vmul.f32 %v165, %v119
    %v167 = vsel %vm110, %v166, 0.0
    %v168 = vadd.f32 %v161, %v167
    %s169 = scalar_lea.vmem [#allocation1], 24
    %170 = vst [vmem:[%s169] sm:$0xff] %v168
    %vm171 = vcmask 23568
    %s172 = scalar_lea.vmem [#allocation1], 2
    %v173 = vld [vmem:[%s172] ss:$0 sm:$0xff]
    %s174 = scalar_lea.vmem [#allocation0], 2
    %v175 = vld [vmem:[%s174] ss:$0 sm:$0xff]
    %v176 = vmul.f32 %v173, %v173
    %177 = vadd.xlane.f32.xlu0 %v176
    %v178 = vpop.xlane.xlu0 %177
    %v179 = vsub.f32 %v175, %v178
    %v180 = vrsqrt.pop %v179
    %v181 = vld [vmem:[#allocation0] sm:$0xff]
    %v182 = vld [vmem:[#allocation1] sm:$0xff]
    %v183 = vmul.f32 %v182, %v173
    %184 = vadd.xlane.f32.xlu0 %v183
    %v185 = vpop.xlane.xlu0 %184
    %v186 = vsub.f32 %v181, %v185
    %v187 = vmul.f32 %v186, %v180
    %vm188 = vcmask 1047554
    %vm189 = vmand %vm171, %vm188
    %v190 = vsel %vm189, %v187, 0.0
    %v191 = vadd.f32 %v182, %v190
    %192 = vst [vmem:[#allocation1] sm:$0xff] %v191
    %s193 = scalar_lea.vmem [#allocation0], 8
    %v194 = vld [vmem:[%s193] sm:$0xff]
    %s195 = scalar_lea.vmem [#allocation1], 8
    %v196 = vld [vmem:[%s195] sm:$0xff]
    %v197 = vmul.f32 %v196, %v173
    %198 = vadd.xlane.f32.xlu0 %v197
    %v199 = vpop.xlane.xlu0 %198
    %v200 = vsub.f32 %v194, %v199
    %v201 = vmul.f32 %v200, %v180
    %v202 = vsel %vm171, %v201, 0.0
    %v203 = vadd.f32 %v196, %v202
    %s204 = scalar_lea.vmem [#allocation1], 8
    %205 = vst [vmem:[%s204] sm:$0xff] %v203
    %s206 = scalar_lea.vmem [#allocation0], 16
    %v207 = vld [vmem:[%s206] sm:$0xff]
    %s208 = scalar_lea.vmem [#allocation1], 16
    %v209 = vld [vmem:[%s208] sm:$0xff]
    %v210 = vmul.f32 %v209, %v173
    %211 = vadd.xlane.f32.xlu0 %v210
    %v212 = vpop.xlane.xlu0 %211
    %v213 = vsub.f32 %v207, %v212
    %v214 = vmul.f32 %v213, %v180
    %v215 = vsel %vm171, %v214, 0.0
    %v216 = vadd.f32 %v209, %v215
    %s217 = scalar_lea.vmem [#allocation1], 16
    %218 = vst [vmem:[%s217] sm:$0xff] %v216
    %s219 = scalar_lea.vmem [#allocation0], 24
    %v220 = vld [vmem:[%s219] sm:$0xff]
    %s221 = scalar_lea.vmem [#allocation1], 24
    %v222 = vld [vmem:[%s221] sm:$0xff]
    %v223 = vmul.f32 %v222, %v173
    %224 = vadd.xlane.f32.xlu0 %v223
    %v225 = vpop.xlane.xlu0 %224
    %v226 = vsub.f32 %v220, %v225
    %v227 = vmul.f32 %v226, %v180
    %v228 = vsel %vm171, %v227, 0.0
    %v229 = vadd.f32 %v222, %v228
    %s230 = scalar_lea.vmem [#allocation1], 24
    %231 = vst [vmem:[%s230] sm:$0xff] %v229
    %vm232 = vcmask 31768
    %s233 = scalar_lea.vmem [#allocation1], 3
    %v234 = vld [vmem:[%s233] ss:$0 sm:$0xff]
    %s235 = scalar_lea.vmem [#allocation0], 3
    %v236 = vld [vmem:[%s235] ss:$0 sm:$0xff]
    %v237 = vmul.f32 %v234, %v234
    %238 = vadd.xlane.f32.xlu0 %v237
    %v239 = vpop.xlane.xlu0 %238
    %v240 = vsub.f32 %v236, %v239
    %v241 = vrsqrt.pop %v240
    %v242 = vld [vmem:[#allocation0] sm:$0xff]
    %v243 = vld [vmem:[#allocation1] sm:$0xff]
    %v244 = vmul.f32 %v243, %v234
    %245 = vadd.xlane.f32.xlu0 %v244
    %v246 = vpop.xlane.xlu0 %245
    %v247 = vsub.f32 %v242, %v246
    %v248 = vmul.f32 %v247, %v241
    %vm249 = vcmask 1047555
    %vm250 = vmand %vm232, %vm249
    %v251 = vsel %vm250, %v248, 0.0
    %v252 = vadd.f32 %v243, %v251
    %253 = vst [vmem:[#allocation1] sm:$0xff] %v252
    %s254 = scalar_lea.vmem [#allocation0], 8
    %v255 = vld [vmem:[%s254] sm:$0xff]
    %s256 = scalar_lea.vmem [#allocation1], 8
    %v257 = vld [vmem:[%s256] sm:$0xff]
    %v258 = vmul.f32 %v257, %v234
    %259 = vadd.xlane.f32.xlu0 %v258
    %v260 = vpop.xlane.xlu0 %259
    %v261 = vsub.f32 %v255, %v260
    %v262 = vmul.f32 %v261, %v241
    %v263 = vsel %vm232, %v262, 0.0
    %v264 = vadd.f32 %v257, %v263
    %s265 = scalar_lea.vmem [#allocation1], 8
    %266 = vst [vmem:[%s265] sm:$0xff] %v264
    %s267 = scalar_lea.vmem [#allocation0], 16
    %v268 = vld [vmem:[%s267] sm:$0xff]
    %s269 = scalar_lea.vmem [#allocation1], 16
    %v270 = vld [vmem:[%s269] sm:$0xff]
    %v271 = vmul.f32 %v270, %v234
    %272 = vadd.xlane.f32.xlu0 %v271
    %v273 = vpop.xlane.xlu0 %272
    %v274 = vsub.f32 %v268, %v273
    %v275 = vmul.f32 %v274, %v241
    %v276 = vsel %vm232, %v275, 0.0
    %v277 = vadd.f32 %v270, %v276
    %s278 = scalar_lea.vmem [#allocation1], 16
    %279 = vst [vmem:[%s278] sm:$0xff] %v277
    %s280 = scalar_lea.vmem [#allocation0], 24
    %v281 = vld [vmem:[%s280] sm:$0xff]
    %s282 = scalar_lea.vmem [#allocation1], 24
    %v283 = vld [vmem:[%s282] sm:$0xff]
    %v284 = vmul.f32 %v283, %v234
    %285 = vadd.xlane.f32.xlu0 %v284
    %v286 = vpop.xlane.xlu0 %285
    %v287 = vsub.f32 %v281, %v286
    %v288 = vmul.f32 %v287, %v241
    %v289 = vsel %vm232, %v288, 0.0
    %v290 = vadd.f32 %v283, %v289
    %s291 = scalar_lea.vmem [#allocation1], 24
    %292 = vst [vmem:[%s291] sm:$0xff] %v290
    %vm293 = vcmask 39968
    %s294 = scalar_lea.vmem [#allocation1], 4
    %v295 = vld [vmem:[%s294] ss:$0 sm:$0xff]
    %s296 = scalar_lea.vmem [#allocation0], 4
    %v297 = vld [vmem:[%s296] ss:$0 sm:$0xff]
    %v298 = vmul.f32 %v295, %v295
    %299 = vadd.xlane.f32.xlu0 %v298
    %v300 = vpop.xlane.xlu0 %299
    %v301 = vsub.f32 %v297, %v300
    %v302 = vrsqrt.pop %v301
    %v303 = vld [vmem:[#allocation0] sm:$0xff]
    %v304 = vld [vmem:[#allocation1] sm:$0xff]
    %v305 = vmul.f32 %v304, %v295
    %306 = vadd.xlane.f32.xlu0 %v305
    %v307 = vpop.xlane.xlu0 %306
    %v308 = vsub.f32 %v303, %v307
    %v309 = vmul.f32 %v308, %v302
    %vm310 = vcmask 1047556
    %vm311 = vmand %vm293, %vm310
    %v312 = vsel %vm311, %v309, 0.0
    %v313 = vadd.f32 %v304, %v312
    %314 = vst [vmem:[#allocation1] sm:$0xff] %v313
    %s315 = scalar_lea.vmem [#allocation0], 8
    %v316 = vld [vmem:[%s315] sm:$0xff]
    %s317 = scalar_lea.vmem [#allocation1], 8
    %v318 = vld [vmem:[%s317] sm:$0xff]
    %v319 = vmul.f32 %v318, %v295
    %320 = vadd.xlane.f32.xlu0 %v319
    %v321 = vpop.xlane.xlu0 %320
    %v322 = vsub.f32 %v316, %v321
    %v323 = vmul.f32 %v322, %v302
    %v324 = vsel %vm293, %v323, 0.0
    %v325 = vadd.f32 %v318, %v324
    %s326 = scalar_lea.vmem [#allocation1], 8
    %327 = vst [vmem:[%s326] sm:$0xff] %v325
    %s328 = scalar_lea.vmem [#allocation0], 16
    %v329 = vld [vmem:[%s328] sm:$0xff]
    %s330 = scalar_lea.vmem [#allocation1], 16
    %v331 = vld [vmem:[%s330] sm:$0xff]
    %v332 = vmul.f32 %v331, %v295
    %333 = vadd.xlane.f32.xlu0 %v332
    %v334 = vpop.xlane.xlu0 %333
    %v335 = vsub.f32 %v329, %v334
    %v336 = vmul.f32 %v335, %v302
    %v337 = vsel %vm293, %v336, 0.0
    %v338 = vadd.f32 %v331, %v337
    %s339 = scalar_lea.vmem [#allocation1], 16
    %340 = vst [vmem:[%s339] sm:$0xff] %v338
    %s341 = scalar_lea.vmem [#allocation0], 24
    %v342 = vld [vmem:[%s341] sm:$0xff]
    %s343 = scalar_lea.vmem [#allocation1], 24
    %v344 = vld [vmem:[%s343] sm:$0xff]
    %v345 = vmul.f32 %v344, %v295
    %346 = vadd.xlane.f32.xlu0 %v345
    %v347 = vpop.xlane.xlu0 %346
    %v348 = vsub.f32 %v342, %v347
    %v349 = vmul.f32 %v348, %v302
    %v350 = vsel %vm293, %v349, 0.0
    %v351 = vadd.f32 %v344, %v350
    %s352 = scalar_lea.vmem [#allocation1], 24
    %353 = vst [vmem:[%s352] sm:$0xff] %v351
    %vm354 = vcmask 48168
    %s355 = scalar_lea.vmem [#allocation1], 5
    %v356 = vld [vmem:[%s355] ss:$0 sm:$0xff]
    %s357 = scalar_lea.vmem [#allocation0], 5
    %v358 = vld [vmem:[%s357] ss:$0 sm:$0xff]
    %v359 = vmul.f32 %v356, %v356
    %360 = vadd.xlane.f32.xlu0 %v359
    %v361 = vpop.xlane.xlu0 %360
    %v362 = vsub.f32 %v358, %v361
    %v363 = vrsqrt.pop %v362
    %v364 = vld [vmem:[#allocation0] sm:$0xff]
    %v365 = vld [vmem:[#allocation1] sm:$0xff]
    %v366 = vmul.f32 %v365, %v356
    %367 = vadd.xlane.f32.xlu0 %v366
    %v368 = vpop.xlane.xlu0 %367
    %v369 = vsub.f32 %v364, %v368
    %v370 = vmul.f32 %v369, %v363
    %vm371 = vcmask 1047557
    %vm372 = vmand %vm354, %vm371
    %v373 = vsel %vm372, %v370, 0.0
    %v374 = vadd.f32 %v365, %v373
    %375 = vst [vmem:[#allocation1] sm:$0xff] %v374
    %s376 = scalar_lea.vmem [#allocation0], 8
    %v377 = vld [vmem:[%s376] sm:$0xff]
    %s378 = scalar_lea.vmem [#allocation1], 8
    %v379 = vld [vmem:[%s378] sm:$0xff]
    %v380 = vmul.f32 %v379, %v356
    %381 = vadd.xlane.f32.xlu0 %v380
    %v382 = vpop.xlane.xlu0 %381
    %v383 = vsub.f32 %v377, %v382
    %v384 = vmul.f32 %v383, %v363
    %v385 = vsel %vm354, %v384, 0.0
    %v386 = vadd.f32 %v379, %v385
    %s387 = scalar_lea.vmem [#allocation1], 8
    %388 = vst [vmem:[%s387] sm:$0xff] %v386
    %s389 = scalar_lea.vmem [#allocation0], 16
    %v390 = vld [vmem:[%s389] sm:$0xff]
    %s391 = scalar_lea.vmem [#allocation1], 16
    %v392 = vld [vmem:[%s391] sm:$0xff]
    %v393 = vmul.f32 %v392, %v356
    %394 = vadd.xlane.f32.xlu0 %v393
    %v395 = vpop.xlane.xlu0 %394
    %v396 = vsub.f32 %v390, %v395
    %v397 = vmul.f32 %v396, %v363
    %v398 = vsel %vm354, %v397, 0.0
    %v399 = vadd.f32 %v392, %v398
    %s400 = scalar_lea.vmem [#allocation1], 16
    %401 = vst [vmem:[%s400] sm:$0xff] %v399
    %s402 = scalar_lea.vmem [#allocation0], 24
    %v403 = vld [vmem:[%s402] sm:$0xff]
    %s404 = scalar_lea.vmem [#allocation1], 24
    %v405 = vld [vmem:[%s404] sm:$0xff]
    %v406 = vmul.f32 %v405, %v356
    %407 = vadd.xlane.f32.xlu0 %v406
    %v408 = vpop.xlane.xlu0 %407
    %v409 = vsub.f32 %v403, %v408
    %v410 = vmul.f32 %v409, %v363
    %v411 = vsel %vm354, %v410, 0.0
    %v412 = vadd.f32 %v405, %v411
    %s413 = scalar_lea.vmem [#allocation1], 24
    %414 = vst [vmem:[%s413] sm:$0xff] %v412
    %vm415 = vcmask 56368
    %s416 = scalar_lea.vmem [#allocation1], 6
    %v417 = vld [vmem:[%s416] ss:$0 sm:$0xff]
    %s418 = scalar_lea.vmem [#allocation0], 6
    %v419 = vld [vmem:[%s418] ss:$0 sm:$0xff]
    %v420 = vmul.f32 %v417, %v417
    %421 = vadd.xlane.f32.xlu0 %v420
    %v422 = vpop.xlane.xlu0 %421
    %v423 = vsub.f32 %v419, %v422
    %v424 = vrsqrt.pop %v423
    %v425 = vld [vmem:[#allocation0] sm:$0xff]
    %v426 = vld [vmem:[#allocation1] sm:$0xff]
    %v427 = vmul.f32 %v426, %v417
    %428 = vadd.xlane.f32.xlu0 %v427
    %v429 = vpop.xlane.xlu0 %428
    %v430 = vsub.f32 %v425, %v429
    %v431 = vmul.f32 %v430, %v424
    %vm432 = vcmask 1047558
    %vm433 = vmand %vm415, %vm432
    %v434 = vsel %vm433, %v431, 0.0
    %v435 = vadd.f32 %v426, %v434
    %436 = vst [vmem:[#allocation1] sm:$0xff] %v435
    %s437 = scalar_lea.vmem [#allocation0], 8
    %v438 = vld [vmem:[%s437] sm:$0xff]
    %s439 = scalar_lea.vmem [#allocation1], 8
    %v440 = vld [vmem:[%s439] sm:$0xff]
    %v441 = vmul.f32 %v440, %v417
    %442 = vadd.xlane.f32.xlu0 %v441
    %v443 = vpop.xlane.xlu0 %442
    %v444 = vsub.f32 %v438, %v443
    %v445 = vmul.f32 %v444, %v424
    %v446 = vsel %vm415, %v445, 0.0
    %v447 = vadd.f32 %v440, %v446
    %s448 = scalar_lea.vmem [#allocation1], 8
    %449 = vst [vmem:[%s448] sm:$0xff] %v447
    %s450 = scalar_lea.vmem [#allocation0], 16
    %v451 = vld [vmem:[%s450] sm:$0xff]
    %s452 = scalar_lea.vmem [#allocation1], 16
    %v453 = vld [vmem:[%s452] sm:$0xff]
    %v454 = vmul.f32 %v453, %v417
    %455 = vadd.xlane.f32.xlu0 %v454
    %v456 = vpop.xlane.xlu0 %455
    %v457 = vsub.f32 %v451, %v456
    %v458 = vmul.f32 %v457, %v424
    %v459 = vsel %vm415, %v458, 0.0
    %v460 = vadd.f32 %v453, %v459
    %s461 = scalar_lea.vmem [#allocation1], 16
    %462 = vst [vmem:[%s461] sm:$0xff] %v460
    %s463 = scalar_lea.vmem [#allocation0], 24
    %v464 = vld [vmem:[%s463] sm:$0xff]
    %s465 = scalar_lea.vmem [#allocation1], 24
    %v466 = vld [vmem:[%s465] sm:$0xff]
    %v467 = vmul.f32 %v466, %v417
    %468 = vadd.xlane.f32.xlu0 %v467
    %v469 = vpop.xlane.xlu0 %468
    %v470 = vsub.f32 %v464, %v469
    %v471 = vmul.f32 %v470, %v424
    %v472 = vsel %vm415, %v471, 0.0
    %v473 = vadd.f32 %v466, %v472
    %s474 = scalar_lea.vmem [#allocation1], 24
    %475 = vst [vmem:[%s474] sm:$0xff] %v473
    %vm476 = vcmask 64568
    %s477 = scalar_lea.vmem [#allocation1], 7
    %v478 = vld [vmem:[%s477] ss:$0 sm:$0xff]
    %s479 = scalar_lea.vmem [#allocation0], 7
    %v480 = vld [vmem:[%s479] ss:$0 sm:$0xff]
    %v481 = vmul.f32 %v478, %v478
    %482 = vadd.xlane.f32.xlu0 %v481
    %v483 = vpop.xlane.xlu0 %482
    %v484 = vsub.f32 %v480, %v483
    %v485 = vrsqrt.pop %v484
    %v486 = vld [vmem:[#allocation0] sm:$0xff]
    %v487 = vld [vmem:[#allocation1] sm:$0xff]
    %v488 = vmul.f32 %v487, %v478
    %489 = vadd.xlane.f32.xlu0 %v488
    %v490 = vpop.xlane.xlu0 %489
    %v491 = vsub.f32 %v486, %v490
    %v492 = vmul.f32 %v491, %v485
    %vm493 = vcmask 1047559
    %vm494 = vmand %vm476, %vm493
    %v495 = vsel %vm494, %v492, 0.0
    %v496 = vadd.f32 %v487, %v495
    %497 = vst [vmem:[#allocation1] sm:$0xff] %v496
    %s498 = scalar_lea.vmem [#allocation0], 8
    %v499 = vld [vmem:[%s498] sm:$0xff]
    %s500 = scalar_lea.vmem [#allocation1], 8
    %v501 = vld [vmem:[%s500] sm:$0xff]
    %v502 = vmul.f32 %v501, %v478
    %503 = vadd.xlane.f32.xlu0 %v502
    %v504 = vpop.xlane.xlu0 %503
    %v505 = vsub.f32 %v499, %v504
    %v506 = vmul.f32 %v505, %v485
    %v507 = vsel %vm476, %v506, 0.0
    %v508 = vadd.f32 %v501, %v507
    %s509 = scalar_lea.vmem [#allocation1], 8
    %510 = vst [vmem:[%s509] sm:$0xff] %v508
    %s511 = scalar_lea.vmem [#allocation0], 16
    %v512 = vld [vmem:[%s511] sm:$0xff]
    %s513 = scalar_lea.vmem [#allocation1], 16
    %v514 = vld [vmem:[%s513] sm:$0xff]
    %v515 = vmul.f32 %v514, %v478
    %516 = vadd.xlane.f32.xlu0 %v515
    %v517 = vpop.xlane.xlu0 %516
    %v518 = vsub.f32 %v512, %v517
    %v519 = vmul.f32 %v518, %v485
    %v520 = vsel %vm476, %v519, 0.0
    %v521 = vadd.f32 %v514, %v520
    %s522 = scalar_lea.vmem [#allocation1], 16
    %523 = vst [vmem:[%s522] sm:$0xff] %v521
    %s524 = scalar_lea.vmem [#allocation0], 24
    %v525 = vld [vmem:[%s524] sm:$0xff]
    %s526 = scalar_lea.vmem [#allocation1], 24
    %v527 = vld [vmem:[%s526] sm:$0xff]
    %v528 = vmul.f32 %v527, %v478
    %529 = vadd.xlane.f32.xlu0 %v528
    %v530 = vpop.xlane.xlu0 %529
    %v531 = vsub.f32 %v525, %v530
    %v532 = vmul.f32 %v531, %v485
    %v533 = vsel %vm476, %v532, 0.0
    %v534 = vadd.f32 %v527, %v533
    %s535 = scalar_lea.vmem [#allocation1], 24
    %536 = vst [vmem:[%s535] sm:$0xff] %v534
    %vm537 = vcmask 72768
    %s538 = scalar_lea.vmem [#allocation1], 8
    %v539 = vld [vmem:[%s538] ss:$0 sm:$0xff]
    %s540 = scalar_lea.vmem [#allocation0], 8
    %v541 = vld [vmem:[%s540] ss:$0 sm:$0xff]
    %v542 = vmul.f32 %v539, %v539
    %543 = vadd.xlane.f32.xlu0 %v542
    %v544 = vpop.xlane.xlu0 %543
    %v545 = vsub.f32 %v541, %v544
    %v546 = vrsqrt.pop %v545
    %s547 = scalar_lea.vmem [#allocation0], 8
    %v548 = vld [vmem:[%s547] sm:$0xff]
    %s549 = scalar_lea.vmem [#allocation1], 8
    %v550 = vld [vmem:[%s549] sm:$0xff]
    %v551 = vmul.f32 %v550, %v539
    %552 = vadd.xlane.f32.xlu0 %v551
    %v553 = vpop.xlane.xlu0 %552
    %v554 = vsub.f32 %v548, %v553
    %v555 = vmul.f32 %v554, %v546
    %v556 = vsel %vm537, %v555, 0.0
    %v557 = vadd.f32 %v550, %v556
    %s558 = scalar_lea.vmem [#allocation1], 8
    %559 = vst [vmem:[%s558] sm:$0xff] %v557
    %s560 = scalar_lea.vmem [#allocation0], 16
    %v561 = vld [vmem:[%s560] sm:$0xff]
    %s562 = scalar_lea.vmem [#allocation1], 16
    %v563 = vld [vmem:[%s562] sm:$0xff]
    %v564 = vmul.f32 %v563, %v539
    %565 = vadd.xlane.f32.xlu0 %v564
    %v566 = vpop.xlane.xlu0 %565
    %v567 = vsub.f32 %v561, %v566
    %v568 = vmul.f32 %v567, %v546
    %v569 = vsel %vm537, %v568, 0.0
    %v570 = vadd.f32 %v563, %v569
    %s571 = scalar_lea.vmem [#allocation1], 16
    %572 = vst [vmem:[%s571] sm:$0xff] %v570
    %s573 = scalar_lea.vmem [#allocation0], 24
    %v574 = vld [vmem:[%s573] sm:$0xff]
    %s575 = scalar_lea.vmem [#allocation1], 24
    %v576 = vld [vmem:[%s575] sm:$0xff]
    %v577 = vmul.f32 %v576, %v539
    %578 = vadd.xlane.f32.xlu0 %v577
    %v579 = vpop.xlane.xlu0 %578
    %v580 = vsub.f32 %v574, %v579
    %v581 = vmul.f32 %v580, %v546
    %v582 = vsel %vm537, %v581, 0.0
    %v583 = vadd.f32 %v576, %v582
    %s584 = scalar_lea.vmem [#allocation1], 24
    %585 = vst [vmem:[%s584] sm:$0xff] %v583
    %vm586 = vcmask 80968
    %s587 = scalar_lea.vmem [#allocation1], 9
    %v588 = vld [vmem:[%s587] ss:$0 sm:$0xff]
    %s589 = scalar_lea.vmem [#allocation0], 9
    %v590 = vld [vmem:[%s589] ss:$0 sm:$0xff]
    %v591 = vmul.f32 %v588, %v588
    %592 = vadd.xlane.f32.xlu0 %v591
    %v593 = vpop.xlane.xlu0 %592
    %v594 = vsub.f32 %v590, %v593
    %v595 = vrsqrt.pop %v594
    %s596 = scalar_lea.vmem [#allocation0], 8
    %v597 = vld [vmem:[%s596] sm:$0xff]
    %s598 = scalar_lea.vmem [#allocation1], 8
    %v599 = vld [vmem:[%s598] sm:$0xff]
    %v600 = vmul.f32 %v599, %v588
    %601 = vadd.xlane.f32.xlu0 %v600
    %v602 = vpop.xlane.xlu0 %601
    %v603 = vsub.f32 %v597, %v602
    %v604 = vmul.f32 %v603, %v595
    %vm605 = vcmask 1047553
    %vm606 = vmand %vm586, %vm605
    %v607 = vsel %vm606, %v604, 0.0
    %v608 = vadd.f32 %v599, %v607
    %s609 = scalar_lea.vmem [#allocation1], 8
    %610 = vst [vmem:[%s609] sm:$0xff] %v608
    %s611 = scalar_lea.vmem [#allocation0], 16
    %v612 = vld [vmem:[%s611] sm:$0xff]
    %s613 = scalar_lea.vmem [#allocation1], 16
    %v614 = vld [vmem:[%s613] sm:$0xff]
    %v615 = vmul.f32 %v614, %v588
    %616 = vadd.xlane.f32.xlu0 %v615
    %v617 = vpop.xlane.xlu0 %616
    %v618 = vsub.f32 %v612, %v617
    %v619 = vmul.f32 %v618, %v595
    %v620 = vsel %vm586, %v619, 0.0
    %v621 = vadd.f32 %v614, %v620
    %s622 = scalar_lea.vmem [#allocation1], 16
    %623 = vst [vmem:[%s622] sm:$0xff] %v621
    %s624 = scalar_lea.vmem [#allocation0], 24
    %v625 = vld [vmem:[%s624] sm:$0xff]
    %s626 = scalar_lea.vmem [#allocation1], 24
    %v627 = vld [vmem:[%s626] sm:$0xff]
    %v628 = vmul.f32 %v627, %v588
    %629 = vadd.xlane.f32.xlu0 %v628
    %v630 = vpop.xlane.xlu0 %629
    %v631 = vsub.f32 %v625, %v630
    %v632 = vmul.f32 %v631, %v595
    %v633 = vsel %vm586, %v632, 0.0
    %v634 = vadd.f32 %v627, %v633
    %s635 = scalar_lea.vmem [#allocation1], 24
    %636 = vst [vmem:[%s635] sm:$0xff] %v634
    %vm637 = vcmask 89168
    %s638 = scalar_lea.vmem [#allocation1], 10
    %v639 = vld [vmem:[%s638] ss:$0 sm:$0xff]
    %s640 = scalar_lea.vmem [#allocation0], 10
    %v641 = vld [vmem:[%s640] ss:$0 sm:$0xff]
    %v642 = vmul.f32 %v639, %v639
    %643 = vadd.xlane.f32.xlu0 %v642
    %v644 = vpop.xlane.xlu0 %643
    %v645 = vsub.f32 %v641, %v644
    %v646 = vrsqrt.pop %v645
    %s647 = scalar_lea.vmem [#allocation0], 8
    %v648 = vld [vmem:[%s647] sm:$0xff]
    %s649 = scalar_lea.vmem [#allocation1], 8
    %v650 = vld [vmem:[%s649] sm:$0xff]
    %v651 = vmul.f32 %v650, %v639
    %652 = vadd.xlane.f32.xlu0 %v651
    %v653 = vpop.xlane.xlu0 %652
    %v654 = vsub.f32 %v648, %v653
    %v655 = vmul.f32 %v654, %v646
    %vm656 = vcmask 1047554
    %vm657 = vmand %vm637, %vm656
    %v658 = vsel %vm657, %v655, 0.0
    %v659 = vadd.f32 %v650, %v658
    %s660 = scalar_lea.vmem [#allocation1], 8
    %661 = vst [vmem:[%s660] sm:$0xff] %v659
    %s662 = scalar_lea.vmem [#allocation0], 16
    %v663 = vld [vmem:[%s662] sm:$0xff]
    %s664 = scalar_lea.vmem [#allocation1], 16
    %v665 = vld [vmem:[%s664] sm:$0xff]
    %v666 = vmul.f32 %v665, %v639
    %667 = vadd.xlane.f32.xlu0 %v666
    %v668 = vpop.xlane.xlu0 %667
    %v669 = vsub.f32 %v663, %v668
    %v670 = vmul.f32 %v669, %v646
    %v671 = vsel %vm637, %v670, 0.0
    %v672 = vadd.f32 %v665, %v671
    %s673 = scalar_lea.vmem [#allocation1], 16
    %674 = vst [vmem:[%s673] sm:$0xff] %v672
    %s675 = scalar_lea.vmem [#allocation0], 24
    %v676 = vld [vmem:[%s675] sm:$0xff]
    %s677 = scalar_lea.vmem [#allocation1], 24
    %v678 = vld [vmem:[%s677] sm:$0xff]
    %v679 = vmul.f32 %v678, %v639
    %680 = vadd.xlane.f32.xlu0 %v679
    %v681 = vpop.xlane.xlu0 %680
    %v682 = vsub.f32 %v676, %v681
    %v683 = vmul.f32 %v682, %v646
    %v684 = vsel %vm637, %v683, 0.0
    %v685 = vadd.f32 %v678, %v684
    %s686 = scalar_lea.vmem [#allocation1], 24
    %687 = vst [vmem:[%s686] sm:$0xff] %v685
    %vm688 = vcmask 97368
    %s689 = scalar_lea.vmem [#allocation1], 11
    %v690 = vld [vmem:[%s689] ss:$0 sm:$0xff]
    %s691 = scalar_lea.vmem [#allocation0], 11
    %v692 = vld [vmem:[%s691] ss:$0 sm:$0xff]
    %v693 = vmul.f32 %v690, %v690
    %694 = vadd.xlane.f32.xlu0 %v693
    %v695 = vpop.xlane.xlu0 %694
    %v696 = vsub.f32 %v692, %v695
    %v697 = vrsqrt.pop %v696
    %s698 = scalar_lea.vmem [#allocation0], 8
    %v699 = vld [vmem:[%s698] sm:$0xff]
    %s700 = scalar_lea.vmem [#allocation1], 8
    %v701 = vld [vmem:[%s700] sm:$0xff]
    %v702 = vmul.f32 %v701, %v690
    %703 = vadd.xlane.f32.xlu0 %v702
    %v704 = vpop.xlane.xlu0 %703
    %v705 = vsub.f32 %v699, %v704
    %v706 = vmul.f32 %v705, %v697
    %vm707 = vcmask 1047555
    %vm708 = vmand %vm688, %vm707
    %v709 = vsel %vm708, %v706, 0.0
    %v710 = vadd.f32 %v701, %v709
    %s711 = scalar_lea.vmem [#allocation1], 8
    %712 = vst [vmem:[%s711] sm:$0xff] %v710
    %s713 = scalar_lea.vmem [#allocation0], 16
    %v714 = vld [vmem:[%s713] sm:$0xff]
    %s715 = scalar_lea.vmem [#allocation1], 16
    %v716 = vld [vmem:[%s715] sm:$0xff]
    %v717 = vmul.f32 %v716, %v690
    %718 = vadd.xlane.f32.xlu0 %v717
    %v719 = vpop.xlane.xlu0 %718
    %v720 = vsub.f32 %v714, %v719
    %v721 = vmul.f32 %v720, %v697
    %v722 = vsel %vm688, %v721, 0.0
    %v723 = vadd.f32 %v716, %v722
    %s724 = scalar_lea.vmem [#allocation1], 16
    %725 = vst [vmem:[%s724] sm:$0xff] %v723
    %s726 = scalar_lea.vmem [#allocation0], 24
    %v727 = vld [vmem:[%s726] sm:$0xff]
    %s728 = scalar_lea.vmem [#allocation1], 24
    %v729 = vld [vmem:[%s728] sm:$0xff]
    %v730 = vmul.f32 %v729, %v690
    %731 = vadd.xlane.f32.xlu0 %v730
    %v732 = vpop.xlane.xlu0 %731
    %v733 = vsub.f32 %v727, %v732
    %v734 = vmul.f32 %v733, %v697
    %v735 = vsel %vm688, %v734, 0.0
    %v736 = vadd.f32 %v729, %v735
    %s737 = scalar_lea.vmem [#allocation1], 24
    %738 = vst [vmem:[%s737] sm:$0xff] %v736
    %vm739 = vcmask 105568
    %s740 = scalar_lea.vmem [#allocation1], 12
    %v741 = vld [vmem:[%s740] ss:$0 sm:$0xff]
    %s742 = scalar_lea.vmem [#allocation0], 12
    %v743 = vld [vmem:[%s742] ss:$0 sm:$0xff]
    %v744 = vmul.f32 %v741, %v741
    %745 = vadd.xlane.f32.xlu0 %v744
    %v746 = vpop.xlane.xlu0 %745
    %v747 = vsub.f32 %v743, %v746
    %v748 = vrsqrt.pop %v747
    %s749 = scalar_lea.vmem [#allocation0], 8
    %v750 = vld [vmem:[%s749] sm:$0xff]
    %s751 = scalar_lea.vmem [#allocation1], 8
    %v752 = vld [vmem:[%s751] sm:$0xff]
    %v753 = vmul.f32 %v752, %v741
    %754 = vadd.xlane.f32.xlu0 %v753
    %v755 = vpop.xlane.xlu0 %754
    %v756 = vsub.f32 %v750, %v755
    %v757 = vmul.f32 %v756, %v748
    %vm758 = vcmask 1047556
    %vm759 = vmand %vm739, %vm758
    %v760 = vsel %vm759, %v757, 0.0
    %v761 = vadd.f32 %v752, %v760
    %s762 = scalar_lea.vmem [#allocation1], 8
    %763 = vst [vmem:[%s762] sm:$0xff] %v761
    %s764 = scalar_lea.vmem [#allocation0], 16
    %v765 = vld [vmem:[%s764] sm:$0xff]
    %s766 = scalar_lea.vmem [#allocation1], 16
    %v767 = vld [vmem:[%s766] sm:$0xff]
    %v768 = vmul.f32 %v767, %v741
    %769 = vadd.xlane.f32.xlu0 %v768
    %v770 = vpop.xlane.xlu0 %769
    %v771 = vsub.f32 %v765, %v770
    %v772 = vmul.f32 %v771, %v748
    %v773 = vsel %vm739, %v772, 0.0
    %v774 = vadd.f32 %v767, %v773
    %s775 = scalar_lea.vmem [#allocation1], 16
    %776 = vst [vmem:[%s775] sm:$0xff] %v774
    %s777 = scalar_lea.vmem [#allocation0], 24
    %v778 = vld [vmem:[%s777] sm:$0xff]
    %s779 = scalar_lea.vmem [#allocation1], 24
    %v780 = vld [vmem:[%s779] sm:$0xff]
    %v781 = vmul.f32 %v780, %v741
    %782 = vadd.xlane.f32.xlu0 %v781
    %v783 = vpop.xlane.xlu0 %782
    %v784 = vsub.f32 %v778, %v783
    %v785 = vmul.f32 %v784, %v748
    %v786 = vsel %vm739, %v785, 0.0
    %v787 = vadd.f32 %v780, %v786
    %s788 = scalar_lea.vmem [#allocation1], 24
    %789 = vst [vmem:[%s788] sm:$0xff] %v787
    %vm790 = vcmask 113768
    %s791 = scalar_lea.vmem [#allocation1], 13
    %v792 = vld [vmem:[%s791] ss:$0 sm:$0xff]
    %s793 = scalar_lea.vmem [#allocation0], 13
    %v794 = vld [vmem:[%s793] ss:$0 sm:$0xff]
    %v795 = vmul.f32 %v792, %v792
    %796 = vadd.xlane.f32.xlu0 %v795
    %v797 = vpop.xlane.xlu0 %796
    %v798 = vsub.f32 %v794, %v797
    %v799 = vrsqrt.pop %v798
    %s800 = scalar_lea.vmem [#allocation0], 8
    %v801 = vld [vmem:[%s800] sm:$0xff]
    %s802 = scalar_lea.vmem [#allocation1], 8
    %v803 = vld [vmem:[%s802] sm:$0xff]
    %v804 = vmul.f32 %v803, %v792
    %805 = vadd.xlane.f32.xlu0 %v804
    %v806 = vpop.xlane.xlu0 %805
    %v807 = vsub.f32 %v801, %v806
    %v808 = vmul.f32 %v807, %v799
    %vm809 = vcmask 1047557
    %vm810 = vmand %vm790, %vm809
    %v811 = vsel %vm810, %v808, 0.0
    %v812 = vadd.f32 %v803, %v811
    %s813 = scalar_lea.vmem [#allocation1], 8
    %814 = vst [vmem:[%s813] sm:$0xff] %v812
    %s815 = scalar_lea.vmem [#allocation0], 16
    %v816 = vld [vmem:[%s815] sm:$0xff]
    %s817 = scalar_lea.vmem [#allocation1], 16
    %v818 = vld [vmem:[%s817] sm:$0xff]
    %v819 = vmul.f32 %v818, %v792
    %820 = vadd.xlane.f32.xlu0 %v819
    %v821 = vpop.xlane.xlu0 %820
    %v822 = vsub.f32 %v816, %v821
    %v823 = vmul.f32 %v822, %v799
    %v824 = vsel %vm790, %v823, 0.0
    %v825 = vadd.f32 %v818, %v824
    %s826 = scalar_lea.vmem [#allocation1], 16
    %827 = vst [vmem:[%s826] sm:$0xff] %v825
    %s828 = scalar_lea.vmem [#allocation0], 24
    %v829 = vld [vmem:[%s828] sm:$0xff]
    %s830 = scalar_lea.vmem [#allocation1], 24
    %v831 = vld [vmem:[%s830] sm:$0xff]
    %v832 = vmul.f32 %v831, %v792
    %833 = vadd.xlane.f32.xlu0 %v832
    %v834 = vpop.xlane.xlu0 %833
    %v835 = vsub.f32 %v829, %v834
    %v836 = vmul.f32 %v835, %v799
    %v837 = vsel %vm790, %v836, 0.0
    %v838 = vadd.f32 %v831, %v837
    %s839 = scalar_lea.vmem [#allocation1], 24
    %840 = vst [vmem:[%s839] sm:$0xff] %v838
    %vm841 = vcmask 121968
    %s842 = scalar_lea.vmem [#allocation1], 14
    %v843 = vld [vmem:[%s842] ss:$0 sm:$0xff]
    %s844 = scalar_lea.vmem [#allocation0], 14
    %v845 = vld [vmem:[%s844] ss:$0 sm:$0xff]
    %v846 = vmul.f32 %v843, %v843
    %847 = vadd.xlane.f32.xlu0 %v846
    %v848 = vpop.xlane.xlu0 %847
    %v849 = vsub.f32 %v845, %v848
    %v850 = vrsqrt.pop %v849
    %s851 = scalar_lea.vmem [#allocation0], 8
    %v852 = vld [vmem:[%s851] sm:$0xff]
    %s853 = scalar_lea.vmem [#allocation1], 8
    %v854 = vld [vmem:[%s853] sm:$0xff]
    %v855 = vmul.f32 %v854, %v843
    %856 = vadd.xlane.f32.xlu0 %v855
    %v857 = vpop.xlane.xlu0 %856
    %v858 = vsub.f32 %v852, %v857
    %v859 = vmul.f32 %v858, %v850
    %vm860 = vcmask 1047558
    %vm861 = vmand %vm841, %vm860
    %v862 = vsel %vm861, %v859, 0.0
    %v863 = vadd.f32 %v854, %v862
    %s864 = scalar_lea.vmem [#allocation1], 8
    %865 = vst [vmem:[%s864] sm:$0xff] %v863
    %s866 = scalar_lea.vmem [#allocation0], 16
    %v867 = vld [vmem:[%s866] sm:$0xff]
    %s868 = scalar_lea.vmem [#allocation1], 16
    %v869 = vld [vmem:[%s868] sm:$0xff]
    %v870 = vmul.f32 %v869, %v843
    %871 = vadd.xlane.f32.xlu0 %v870
    %v872 = vpop.xlane.xlu0 %871
    %v873 = vsub.f32 %v867, %v872
    %v874 = vmul.f32 %v873, %v850
    %v875 = vsel %vm841, %v874, 0.0
    %v876 = vadd.f32 %v869, %v875
    %s877 = scalar_lea.vmem [#allocation1], 16
    %878 = vst [vmem:[%s877] sm:$0xff] %v876
    %s879 = scalar_lea.vmem [#allocation0], 24
    %v880 = vld [vmem:[%s879] sm:$0xff]
    %s881 = scalar_lea.vmem [#allocation1], 24
    %v882 = vld [vmem:[%s881] sm:$0xff]
    %v883 = vmul.f32 %v882, %v843
    %884 = vadd.xlane.f32.xlu0 %v883
    %v885 = vpop.xlane.xlu0 %884
    %v886 = vsub.f32 %v880, %v885
    %v887 = vmul.f32 %v886, %v850
    %v888 = vsel %vm841, %v887, 0.0
    %v889 = vadd.f32 %v882, %v888
    %s890 = scalar_lea.vmem [#allocation1], 24
    %891 = vst [vmem:[%s890] sm:$0xff] %v889
    %vm892 = vcmask 130168
    %s893 = scalar_lea.vmem [#allocation1], 15
    %v894 = vld [vmem:[%s893] ss:$0 sm:$0xff]
    %s895 = scalar_lea.vmem [#allocation0], 15
    %v896 = vld [vmem:[%s895] ss:$0 sm:$0xff]
    %v897 = vmul.f32 %v894, %v894
    %898 = vadd.xlane.f32.xlu0 %v897
    %v899 = vpop.xlane.xlu0 %898
    %v900 = vsub.f32 %v896, %v899
    %v901 = vrsqrt.pop %v900
    %s902 = scalar_lea.vmem [#allocation0], 8
    %v903 = vld [vmem:[%s902] sm:$0xff]
    %s904 = scalar_lea.vmem [#allocation1], 8
    %v905 = vld [vmem:[%s904] sm:$0xff]
    %v906 = vmul.f32 %v905, %v894
    %907 = vadd.xlane.f32.xlu0 %v906
    %v908 = vpop.xlane.xlu0 %907
    %v909 = vsub.f32 %v903, %v908
    %v910 = vmul.f32 %v909, %v901
    %vm911 = vcmask 1047559
    %vm912 = vmand %vm892, %vm911
    %v913 = vsel %vm912, %v910, 0.0
    %v914 = vadd.f32 %v905, %v913
    %s915 = scalar_lea.vmem [#allocation1], 8
    %916 = vst [vmem:[%s915] sm:$0xff] %v914
    %s917 = scalar_lea.vmem [#allocation0], 16
    %v918 = vld [vmem:[%s917] sm:$0xff]
    %s919 = scalar_lea.vmem [#allocation1], 16
    %v920 = vld [vmem:[%s919] sm:$0xff]
    %v921 = vmul.f32 %v920, %v894
    %922 = vadd.xlane.f32.xlu0 %v921
    %v923 = vpop.xlane.xlu0 %922
    %v924 = vsub.f32 %v918, %v923
    %v925 = vmul.f32 %v924, %v901
    %v926 = vsel %vm892, %v925, 0.0
    %v927 = vadd.f32 %v920, %v926
    %s928 = scalar_lea.vmem [#allocation1], 16
    %929 = vst [vmem:[%s928] sm:$0xff] %v927
    %s930 = scalar_lea.vmem [#allocation0], 24
    %v931 = vld [vmem:[%s930] sm:$0xff]
    %s932 = scalar_lea.vmem [#allocation1], 24
    %v933 = vld [vmem:[%s932] sm:$0xff]
    %v934 = vmul.f32 %v933, %v894
    %935 = vadd.xlane.f32.xlu0 %v934
    %v936 = vpop.xlane.xlu0 %935
    %v937 = vsub.f32 %v931, %v936
    %v938 = vmul.f32 %v937, %v901
    %v939 = vsel %vm892, %v938, 0.0
    %v940 = vadd.f32 %v933, %v939
    %s941 = scalar_lea.vmem [#allocation1], 24
    %942 = vst [vmem:[%s941] sm:$0xff] %v940
    %vm943 = vcmask 138368
    %s944 = scalar_lea.vmem [#allocation1], 16
    %v945 = vld [vmem:[%s944] ss:$0 sm:$0xff]
    %s946 = scalar_lea.vmem [#allocation0], 16
    %v947 = vld [vmem:[%s946] ss:$0 sm:$0xff]
    %v948 = vmul.f32 %v945, %v945
    %949 = vadd.xlane.f32.xlu0 %v948
    %v950 = vpop.xlane.xlu0 %949
    %v951 = vsub.f32 %v947, %v950
    %v952 = vrsqrt.pop %v951
    %s953 = scalar_lea.vmem [#allocation0], 16
    %v954 = vld [vmem:[%s953] sm:$0xff]
    %s955 = scalar_lea.vmem [#allocation1], 16
    %v956 = vld [vmem:[%s955] sm:$0xff]
    %v957 = vmul.f32 %v956, %v945
    %958 = vadd.xlane.f32.xlu0 %v957
    %v959 = vpop.xlane.xlu0 %958
    %v960 = vsub.f32 %v954, %v959
    %v961 = vmul.f32 %v960, %v952
    %v962 = vsel %vm943, %v961, 0.0
    %v963 = vadd.f32 %v956, %v962
    %s964 = scalar_lea.vmem [#allocation1], 16
    %965 = vst [vmem:[%s964] sm:$0xff] %v963
    %s966 = scalar_lea.vmem [#allocation0], 24
    %v967 = vld [vmem:[%s966] sm:$0xff]
    %s968 = scalar_lea.vmem [#allocation1], 24
    %v969 = vld [vmem:[%s968] sm:$0xff]
    %v970 = vmul.f32 %v969, %v945
    %971 = vadd.xlane.f32.xlu0 %v970
    %v972 = vpop.xlane.xlu0 %971
    %v973 = vsub.f32 %v967, %v972
    %v974 = vmul.f32 %v973, %v952
    %v975 = vsel %vm943, %v974, 0.0
    %v976 = vadd.f32 %v969, %v975
    %s977 = scalar_lea.vmem [#allocation1], 24
    %978 = vst [vmem:[%s977] sm:$0xff] %v976
    %vm979 = vcmask 146568
    %s980 = scalar_lea.vmem [#allocation1], 17
    %v981 = vld [vmem:[%s980] ss:$0 sm:$0xff]
    %s982 = scalar_lea.vmem [#allocation0], 17
    %v983 = vld [vmem:[%s982] ss:$0 sm:$0xff]
    %v984 = vmul.f32 %v981, %v981
    %985 = vadd.xlane.f32.xlu0 %v984
    %v986 = vpop.xlane.xlu0 %985
    %v987 = vsub.f32 %v983, %v986
    %v988 = vrsqrt.pop %v987
    %s989 = scalar_lea.vmem [#allocation0], 16
    %v990 = vld [vmem:[%s989] sm:$0xff]
    %s991 = scalar_lea.vmem [#allocation1], 16
    %v992 = vld [vmem:[%s991] sm:$0xff]
    %v993 = vmul.f32 %v992, %v981
    %994 = vadd.xlane.f32.xlu0 %v993
    %v995 = vpop.xlane.xlu0 %994
    %v996 = vsub.f32 %v990, %v995
    %v997 = vmul.f32 %v996, %v988
    %vm998 = vcmask 1047553
    %vm999 = vmand %vm979, %vm998
    %v1000 = vsel %vm999, %v997, 0.0
    %v1001 = vadd.f32 %v992, %v1000
    %s1002 = scalar_lea.vmem [#allocation1], 16
    %1003 = vst [vmem:[%s1002] sm:$0xff] %v1001
    %s1004 = scalar_lea.vmem [#allocation0], 24
    %v1005 = vld [vmem:[%s1004] sm:$0xff]
    %s1006 = scalar_lea.vmem [#allocation1], 24
    %v1007 = vld [vmem:[%s1006] sm:$0xff]
    %v1008 = vmul.f32 %v1007, %v981
    %1009 = vadd.xlane.f32.xlu0 %v1008
    %v1010 = vpop.xlane.xlu0 %1009
    %v1011 = vsub.f32 %v1005, %v1010
    %v1012 = vmul.f32 %v1011, %v988
    %v1013 = vsel %vm979, %v1012, 0.0
    %v1014 = vadd.f32 %v1007, %v1013
    %s1015 = scalar_lea.vmem [#allocation1], 24
    %1016 = vst [vmem:[%s1015] sm:$0xff] %v1014
    %vm1017 = vcmask 154768
    %s1018 = scalar_lea.vmem [#allocation1], 18
    %v1019 = vld [vmem:[%s1018] ss:$0 sm:$0xff]
    %s1020 = scalar_lea.vmem [#allocation0], 18
    %v1021 = vld [vmem:[%s1020] ss:$0 sm:$0xff]
    %v1022 = vmul.f32 %v1019, %v1019
    %1023 = vadd.xlane.f32.xlu0 %v1022
    %v1024 = vpop.xlane.xlu0 %1023
    %v1025 = vsub.f32 %v1021, %v1024
    %v1026 = vrsqrt.pop %v1025
    %s1027 = scalar_lea.vmem [#allocation0], 16
    %v1028 = vld [vmem:[%s1027] sm:$0xff]
    %s1029 = scalar_lea.vmem [#allocation1], 16
    %v1030 = vld [vmem:[%s1029] sm:$0xff]
    %v1031 = vmul.f32 %v1030, %v1019
    %1032 = vadd.xlane.f32.xlu0 %v1031
    %v1033 = vpop.xlane.xlu0 %1032
    %v1034 = vsub.f32 %v1028, %v1033
    %v1035 = vmul.f32 %v1034, %v1026
    %vm1036 = vcmask 1047554
    %vm1037 = vmand %vm1017, %vm1036
    %v1038 = vsel %vm1037, %v1035, 0.0
    %v1039 = vadd.f32 %v1030, %v1038
    %s1040 = scalar_lea.vmem [#allocation1], 16
    %1041 = vst [vmem:[%s1040] sm:$0xff] %v1039
    %s1042 = scalar_lea.vmem [#allocation0], 24
    %v1043 = vld [vmem:[%s1042] sm:$0xff]
    %s1044 = scalar_lea.vmem [#allocation1], 24
    %v1045 = vld [vmem:[%s1044] sm:$0xff]
    %v1046 = vmul.f32 %v1045, %v1019
    %1047 = vadd.xlane.f32.xlu0 %v1046
    %v1048 = vpop.xlane.xlu0 %1047
    %v1049 = vsub.f32 %v1043, %v1048
    %v1050 = vmul.f32 %v1049, %v1026
    %v1051 = vsel %vm1017, %v1050, 0.0
    %v1052 = vadd.f32 %v1045, %v1051
    %s1053 = scalar_lea.vmem [#allocation1], 24
    %1054 = vst [vmem:[%s1053] sm:$0xff] %v1052
    %vm1055 = vcmask 162968
    %s1056 = scalar_lea.vmem [#allocation1], 19
    %v1057 = vld [vmem:[%s1056] ss:$0 sm:$0xff]
    %s1058 = scalar_lea.vmem [#allocation0], 19
    %v1059 = vld [vmem:[%s1058] ss:$0 sm:$0xff]
    %v1060 = vmul.f32 %v1057, %v1057
    %1061 = vadd.xlane.f32.xlu0 %v1060
    %v1062 = vpop.xlane.xlu0 %1061
    %v1063 = vsub.f32 %v1059, %v1062
    %v1064 = vrsqrt.pop %v1063
    %s1065 = scalar_lea.vmem [#allocation0], 16
    %v1066 = vld [vmem:[%s1065] sm:$0xff]
    %s1067 = scalar_lea.vmem [#allocation1], 16
    %v1068 = vld [vmem:[%s1067] sm:$0xff]
    %v1069 = vmul.f32 %v1068, %v1057
    %1070 = vadd.xlane.f32.xlu0 %v1069
    %v1071 = vpop.xlane.xlu0 %1070
    %v1072 = vsub.f32 %v1066, %v1071
    %v1073 = vmul.f32 %v1072, %v1064
    %vm1074 = vcmask 1047555
    %vm1075 = vmand %vm1055, %vm1074
    %v1076 = vsel %vm1075, %v1073, 0.0
    %v1077 = vadd.f32 %v1068, %v1076
    %s1078 = scalar_lea.vmem [#allocation1], 16
    %1079 = vst [vmem:[%s1078] sm:$0xff] %v1077
    %s1080 = scalar_lea.vmem [#allocation0], 24
    %v1081 = vld [vmem:[%s1080] sm:$0xff]
    %s1082 = scalar_lea.vmem [#allocation1], 24
    %v1083 = vld [vmem:[%s1082] sm:$0xff]
    %v1084 = vmul.f32 %v1083, %v1057
    %1085 = vadd.xlane.f32.xlu0 %v1084
    %v1086 = vpop.xlane.xlu0 %1085
    %v1087 = vsub.f32 %v1081, %v1086
    %v1088 = vmul.f32 %v1087, %v1064
    %v1089 = vsel %vm1055, %v1088, 0.0
    %v1090 = vadd.f32 %v1083, %v1089
    %s1091 = scalar_lea.vmem [#allocation1], 24
    %1092 = vst [vmem:[%s1091] sm:$0xff] %v1090
    %vm1093 = vcmask 171168
    %s1094 = scalar_lea.vmem [#allocation1], 20
    %v1095 = vld [vmem:[%s1094] ss:$0 sm:$0xff]
    %s1096 = scalar_lea.vmem [#allocation0], 20
    %v1097 = vld [vmem:[%s1096] ss:$0 sm:$0xff]
    %v1098 = vmul.f32 %v1095, %v1095
    %1099 = vadd.xlane.f32.xlu0 %v1098
    %v1100 = vpop.xlane.xlu0 %1099
    %v1101 = vsub.f32 %v1097, %v1100
    %v1102 = vrsqrt.pop %v1101
    %s1103 = scalar_lea.vmem [#allocation0], 16
    %v1104 = vld [vmem:[%s1103] sm:$0xff]
    %s1105 = scalar_lea.vmem [#allocation1], 16
    %v1106 = vld [vmem:[%s1105] sm:$0xff]
    %v1107 = vmul.f32 %v1106, %v1095
    %1108 = vadd.xlane.f32.xlu0 %v1107
    %v1109 = vpop.xlane.xlu0 %1108
    %v1110 = vsub.f32 %v1104, %v1109
    %v1111 = vmul.f32 %v1110, %v1102
    %vm1112 = vcmask 1047556
    %vm1113 = vmand %vm1093, %vm1112
    %v1114 = vsel %vm1113, %v1111, 0.0
    %v1115 = vadd.f32 %v1106, %v1114
    %s1116 = scalar_lea.vmem [#allocation1], 16
    %1117 = vst [vmem:[%s1116] sm:$0xff] %v1115
    %s1118 = scalar_lea.vmem [#allocation0], 24
    %v1119 = vld [vmem:[%s1118] sm:$0xff]
    %s1120 = scalar_lea.vmem [#allocation1], 24
    %v1121 = vld [vmem:[%s1120] sm:$0xff]
    %v1122 = vmul.f32 %v1121, %v1095
    %1123 = vadd.xlane.f32.xlu0 %v1122
    %v1124 = vpop.xlane.xlu0 %1123
    %v1125 = vsub.f32 %v1119, %v1124
    %v1126 = vmul.f32 %v1125, %v1102
    %v1127 = vsel %vm1093, %v1126, 0.0
    %v1128 = vadd.f32 %v1121, %v1127
    %s1129 = scalar_lea.vmem [#allocation1], 24
    %1130 = vst [vmem:[%s1129] sm:$0xff] %v1128
    %vm1131 = vcmask 179368
    %s1132 = scalar_lea.vmem [#allocation1], 21
    %v1133 = vld [vmem:[%s1132] ss:$0 sm:$0xff]
    %s1134 = scalar_lea.vmem [#allocation0], 21
    %v1135 = vld [vmem:[%s1134] ss:$0 sm:$0xff]
    %v1136 = vmul.f32 %v1133, %v1133
    %1137 = vadd.xlane.f32.xlu0 %v1136
    %v1138 = vpop.xlane.xlu0 %1137
    %v1139 = vsub.f32 %v1135, %v1138
    %v1140 = vrsqrt.pop %v1139
    %s1141 = scalar_lea.vmem [#allocation0], 16
    %v1142 = vld [vmem:[%s1141] sm:$0xff]
    %s1143 = scalar_lea.vmem [#allocation1], 16
    %v1144 = vld [vmem:[%s1143] sm:$0xff]
    %v1145 = vmul.f32 %v1144, %v1133
    %1146 = vadd.xlane.f32.xlu0 %v1145
    %v1147 = vpop.xlane.xlu0 %1146
    %v1148 = vsub.f32 %v1142, %v1147
    %v1149 = vmul.f32 %v1148, %v1140
    %vm1150 = vcmask 1047557
    %vm1151 = vmand %vm1131, %vm1150
    %v1152 = vsel %vm1151, %v1149, 0.0
    %v1153 = vadd.f32 %v1144, %v1152
    %s1154 = scalar_lea.vmem [#allocation1], 16
    %1155 = vst [vmem:[%s1154] sm:$0xff] %v1153
    %s1156 = scalar_lea.vmem [#allocation0], 24
    %v1157 = vld [vmem:[%s1156] sm:$0xff]
    %s1158 = scalar_lea.vmem [#allocation1], 24
    %v1159 = vld [vmem:[%s1158] sm:$0xff]
    %v1160 = vmul.f32 %v1159, %v1133
    %1161 = vadd.xlane.f32.xlu0 %v1160
    %v1162 = vpop.xlane.xlu0 %1161
    %v1163 = vsub.f32 %v1157, %v1162
    %v1164 = vmul.f32 %v1163, %v1140
    %v1165 = vsel %vm1131, %v1164, 0.0
    %v1166 = vadd.f32 %v1159, %v1165
    %s1167 = scalar_lea.vmem [#allocation1], 24
    %1168 = vst [vmem:[%s1167] sm:$0xff] %v1166
    %vm1169 = vcmask 187568
    %s1170 = scalar_lea.vmem [#allocation1], 22
    %v1171 = vld [vmem:[%s1170] ss:$0 sm:$0xff]
    %s1172 = scalar_lea.vmem [#allocation0], 22
    %v1173 = vld [vmem:[%s1172] ss:$0 sm:$0xff]
    %v1174 = vmul.f32 %v1171, %v1171
    %1175 = vadd.xlane.f32.xlu0 %v1174
    %v1176 = vpop.xlane.xlu0 %1175
    %v1177 = vsub.f32 %v1173, %v1176
    %v1178 = vrsqrt.pop %v1177
    %s1179 = scalar_lea.vmem [#allocation0], 16
    %v1180 = vld [vmem:[%s1179] sm:$0xff]
    %s1181 = scalar_lea.vmem [#allocation1], 16
    %v1182 = vld [vmem:[%s1181] sm:$0xff]
    %v1183 = vmul.f32 %v1182, %v1171
    %1184 = vadd.xlane.f32.xlu0 %v1183
    %v1185 = vpop.xlane.xlu0 %1184
    %v1186 = vsub.f32 %v1180, %v1185
    %v1187 = vmul.f32 %v1186, %v1178
    %vm1188 = vcmask 1047558
    %vm1189 = vmand %vm1169, %vm1188
    %v1190 = vsel %vm1189, %v1187, 0.0
    %v1191 = vadd.f32 %v1182, %v1190
    %s1192 = scalar_lea.vmem [#allocation1], 16
    %1193 = vst [vmem:[%s1192] sm:$0xff] %v1191
    %s1194 = scalar_lea.vmem [#allocation0], 24
    %v1195 = vld [vmem:[%s1194] sm:$0xff]
    %s1196 = scalar_lea.vmem [#allocation1], 24
    %v1197 = vld [vmem:[%s1196] sm:$0xff]
    %v1198 = vmul.f32 %v1197, %v1171
    %1199 = vadd.xlane.f32.xlu0 %v1198
    %v1200 = vpop.xlane.xlu0 %1199
    %v1201 = vsub.f32 %v1195, %v1200
    %v1202 = vmul.f32 %v1201, %v1178
    %v1203 = vsel %vm1169, %v1202, 0.0
    %v1204 = vadd.f32 %v1197, %v1203
    %s1205 = scalar_lea.vmem [#allocation1], 24
    %1206 = vst [vmem:[%s1205] sm:$0xff] %v1204
    %vm1207 = vcmask 195768
    %s1208 = scalar_lea.vmem [#allocation1], 23
    %v1209 = vld [vmem:[%s1208] ss:$0 sm:$0xff]
    %s1210 = scalar_lea.vmem [#allocation0], 23
    %v1211 = vld [vmem:[%s1210] ss:$0 sm:$0xff]
    %v1212 = vmul.f32 %v1209, %v1209
    %1213 = vadd.xlane.f32.xlu0 %v1212
    %v1214 = vpop.xlane.xlu0 %1213
    %v1215 = vsub.f32 %v1211, %v1214
    %v1216 = vrsqrt.pop %v1215
    %s1217 = scalar_lea.vmem [#allocation0], 16
    %v1218 = vld [vmem:[%s1217] sm:$0xff]
    %s1219 = scalar_lea.vmem [#allocation1], 16
    %v1220 = vld [vmem:[%s1219] sm:$0xff]
    %v1221 = vmul.f32 %v1220, %v1209
    %1222 = vadd.xlane.f32.xlu0 %v1221
    %v1223 = vpop.xlane.xlu0 %1222
    %v1224 = vsub.f32 %v1218, %v1223
    %v1225 = vmul.f32 %v1224, %v1216
    %vm1226 = vcmask 1047559
    %vm1227 = vmand %vm1207, %vm1226
    %v1228 = vsel %vm1227, %v1225, 0.0
    %v1229 = vadd.f32 %v1220, %v1228
    %s1230 = scalar_lea.vmem [#allocation1], 16
    %1231 = vst [vmem:[%s1230] sm:$0xff] %v1229
    %s1232 = scalar_lea.vmem [#allocation0], 24
    %v1233 = vld [vmem:[%s1232] sm:$0xff]
    %s1234 = scalar_lea.vmem [#allocation1], 24
    %v1235 = vld [vmem:[%s1234] sm:$0xff]
    %v1236 = vmul.f32 %v1235, %v1209
    %1237 = vadd.xlane.f32.xlu0 %v1236
    %v1238 = vpop.xlane.xlu0 %1237
    %v1239 = vsub.f32 %v1233, %v1238
    %v1240 = vmul.f32 %v1239, %v1216
    %v1241 = vsel %vm1207, %v1240, 0.0
    %v1242 = vadd.f32 %v1235, %v1241
    %s1243 = scalar_lea.vmem [#allocation1], 24
    %1244 = vst [vmem:[%s1243] sm:$0xff] %v1242
    %vm1245 = vcmask 203968
    %s1246 = scalar_lea.vmem [#allocation1], 24
    %v1247 = vld [vmem:[%s1246] ss:$0 sm:$0xff]
    %s1248 = scalar_lea.vmem [#allocation0], 24
    %v1249 = vld [vmem:[%s1248] ss:$0 sm:$0xff]
    %v1250 = vmul.f32 %v1247, %v1247
    %1251 = vadd.xlane.f32.xlu0 %v1250
    %v1252 = vpop.xlane.xlu0 %1251
    %v1253 = vsub.f32 %v1249, %v1252
    %v1254 = vrsqrt.pop %v1253
    %s1255 = scalar_lea.vmem [#allocation0], 24
    %v1256 = vld [vmem:[%s1255] sm:$0xff]
    %s1257 = scalar_lea.vmem [#allocation1], 24
    %v1258 = vld [vmem:[%s1257] sm:$0xff]
    %v1259 = vmul.f32 %v1258, %v1247
    %1260 = vadd.xlane.f32.xlu0 %v1259
    %v1261 = vpop.xlane.xlu0 %1260
    %v1262 = vsub.f32 %v1256, %v1261
    %v1263 = vmul.f32 %v1262, %v1254
    %v1264 = vsel %vm1245, %v1263, 0.0
    %v1265 = vadd.f32 %v1258, %v1264
    %s1266 = scalar_lea.vmem [#allocation1], 24
    %1267 = vst [vmem:[%s1266] sm:$0xff] %v1265
    %vm1268 = vcmask 212168
    %s1269 = scalar_lea.vmem [#allocation1], 25
    %v1270 = vld [vmem:[%s1269] ss:$0 sm:$0xff]
    %s1271 = scalar_lea.vmem [#allocation0], 25
    %v1272 = vld [vmem:[%s1271] ss:$0 sm:$0xff]
    %v1273 = vmul.f32 %v1270, %v1270
    %1274 = vadd.xlane.f32.xlu0 %v1273
    %v1275 = vpop.xlane.xlu0 %1274
    %v1276 = vsub.f32 %v1272, %v1275
    %v1277 = vrsqrt.pop %v1276
    %s1278 = scalar_lea.vmem [#allocation0], 24
    %v1279 = vld [vmem:[%s1278] sm:$0xff]
    %s1280 = scalar_lea.vmem [#allocation1], 24
    %v1281 = vld [vmem:[%s1280] sm:$0xff]
    %v1282 = vmul.f32 %v1281, %v1270
    %1283 = vadd.xlane.f32.xlu0 %v1282
    %v1284 = vpop.xlane.xlu0 %1283
    %v1285 = vsub.f32 %v1279, %v1284
    %v1286 = vmul.f32 %v1285, %v1277
    %vm1287 = vcmask 1047553
    %vm1288 = vmand %vm1268, %vm1287
    %v1289 = vsel %vm1288, %v1286, 0.0
    %v1290 = vadd.f32 %v1281, %v1289
    %s1291 = scalar_lea.vmem [#allocation1], 24
    %1292 = vst [vmem:[%s1291] sm:$0xff] %v1290
    %vm1293 = vcmask 220368
    %s1294 = scalar_lea.vmem [#allocation1], 26
    %v1295 = vld [vmem:[%s1294] ss:$0 sm:$0xff]
    %s1296 = scalar_lea.vmem [#allocation0], 26
    %v1297 = vld [vmem:[%s1296] ss:$0 sm:$0xff]
    %v1298 = vmul.f32 %v1295, %v1295
    %1299 = vadd.xlane.f32.xlu0 %v1298
    %v1300 = vpop.xlane.xlu0 %1299
    %v1301 = vsub.f32 %v1297, %v1300
    %v1302 = vrsqrt.pop %v1301
    %s1303 = scalar_lea.vmem [#allocation0], 24
    %v1304 = vld [vmem:[%s1303] sm:$0xff]
    %s1305 = scalar_lea.vmem [#allocation1], 24
    %v1306 = vld [vmem:[%s1305] sm:$0xff]
    %v1307 = vmul.f32 %v1306, %v1295
    %1308 = vadd.xlane.f32.xlu0 %v1307
    %v1309 = vpop.xlane.xlu0 %1308
    %v1310 = vsub.f32 %v1304, %v1309
    %v1311 = vmul.f32 %v1310, %v1302
    %vm1312 = vcmask 1047554
    %vm1313 = vmand %vm1293, %vm1312
    %v1314 = vsel %vm1313, %v1311, 0.0
    %v1315 = vadd.f32 %v1306, %v1314
    %s1316 = scalar_lea.vmem [#allocation1], 24
    %1317 = vst [vmem:[%s1316] sm:$0xff] %v1315
    %vm1318 = vcmask 228568
    %s1319 = scalar_lea.vmem [#allocation1], 27
    %v1320 = vld [vmem:[%s1319] ss:$0 sm:$0xff]
    %s1321 = scalar_lea.vmem [#allocation0], 27
    %v1322 = vld [vmem:[%s1321] ss:$0 sm:$0xff]
    %v1323 = vmul.f32 %v1320, %v1320
    %1324 = vadd.xlane.f32.xlu0 %v1323
    %v1325 = vpop.xlane.xlu0 %1324
    %v1326 = vsub.f32 %v1322, %v1325
    %v1327 = vrsqrt.pop %v1326
    %s1328 = scalar_lea.vmem [#allocation0], 24
    %v1329 = vld [vmem:[%s1328] sm:$0xff]
    %s1330 = scalar_lea.vmem [#allocation1], 24
    %v1331 = vld [vmem:[%s1330] sm:$0xff]
    %v1332 = vmul.f32 %v1331, %v1320
    %1333 = vadd.xlane.f32.xlu0 %v1332
    %v1334 = vpop.xlane.xlu0 %1333
    %v1335 = vsub.f32 %v1329, %v1334
    %v1336 = vmul.f32 %v1335, %v1327
    %vm1337 = vcmask 1047555
    %vm1338 = vmand %vm1318, %vm1337
    %v1339 = vsel %vm1338, %v1336, 0.0
    %v1340 = vadd.f32 %v1331, %v1339
    %s1341 = scalar_lea.vmem [#allocation1], 24
    %1342 = vst [vmem:[%s1341] sm:$0xff] %v1340
    %vm1343 = vcmask 236768
    %s1344 = scalar_lea.vmem [#allocation1], 28
    %v1345 = vld [vmem:[%s1344] ss:$0 sm:$0xff]
    %s1346 = scalar_lea.vmem [#allocation0], 28
    %v1347 = vld [vmem:[%s1346] ss:$0 sm:$0xff]
    %v1348 = vmul.f32 %v1345, %v1345
    %1349 = vadd.xlane.f32.xlu0 %v1348
    %v1350 = vpop.xlane.xlu0 %1349
    %v1351 = vsub.f32 %v1347, %v1350
    %v1352 = vrsqrt.pop %v1351
    %s1353 = scalar_lea.vmem [#allocation0], 24
    %v1354 = vld [vmem:[%s1353] sm:$0xff]
    %s1355 = scalar_lea.vmem [#allocation1], 24
    %v1356 = vld [vmem:[%s1355] sm:$0xff]
    %v1357 = vmul.f32 %v1356, %v1345
    %1358 = vadd.xlane.f32.xlu0 %v1357
    %v1359 = vpop.xlane.xlu0 %1358
    %v1360 = vsub.f32 %v1354, %v1359
    %v1361 = vmul.f32 %v1360, %v1352
    %vm1362 = vcmask 1047556
    %vm1363 = vmand %vm1343, %vm1362
    %v1364 = vsel %vm1363, %v1361, 0.0
    %v1365 = vadd.f32 %v1356, %v1364
    %s1366 = scalar_lea.vmem [#allocation1], 24
    %1367 = vst [vmem:[%s1366] sm:$0xff] %v1365
    %vm1368 = vcmask 244968
    %s1369 = scalar_lea.vmem [#allocation1], 29
    %v1370 = vld [vmem:[%s1369] ss:$0 sm:$0xff]
    %s1371 = scalar_lea.vmem [#allocation0], 29
    %v1372 = vld [vmem:[%s1371] ss:$0 sm:$0xff]
    %v1373 = vmul.f32 %v1370, %v1370
    %1374 = vadd.xlane.f32.xlu0 %v1373
    %v1375 = vpop.xlane.xlu0 %1374
    %v1376 = vsub.f32 %v1372, %v1375
    %v1377 = vrsqrt.pop %v1376
    %s1378 = scalar_lea.vmem [#allocation0], 24
    %v1379 = vld [vmem:[%s1378] sm:$0xff]
    %s1380 = scalar_lea.vmem [#allocation1], 24
    %v1381 = vld [vmem:[%s1380] sm:$0xff]
    %v1382 = vmul.f32 %v1381, %v1370
    %1383 = vadd.xlane.f32.xlu0 %v1382
    %v1384 = vpop.xlane.xlu0 %1383
    %v1385 = vsub.f32 %v1379, %v1384
    %v1386 = vmul.f32 %v1385, %v1377
    %vm1387 = vcmask 1047557
    %vm1388 = vmand %vm1368, %vm1387
    %v1389 = vsel %vm1388, %v1386, 0.0
    %v1390 = vadd.f32 %v1381, %v1389
    %s1391 = scalar_lea.vmem [#allocation1], 24
    %1392 = vst [vmem:[%s1391] sm:$0xff] %v1390
    %vm1393 = vcmask 253168
    %s1394 = scalar_lea.vmem [#allocation1], 30
    %v1395 = vld [vmem:[%s1394] ss:$0 sm:$0xff]
    %s1396 = scalar_lea.vmem [#allocation0], 30
    %v1397 = vld [vmem:[%s1396] ss:$0 sm:$0xff]
    %v1398 = vmul.f32 %v1395, %v1395
    %1399 = vadd.xlane.f32.xlu0 %v1398
    %v1400 = vpop.xlane.xlu0 %1399
    %v1401 = vsub.f32 %v1397, %v1400
    %v1402 = vrsqrt.pop %v1401
    %s1403 = scalar_lea.vmem [#allocation0], 24
    %v1404 = vld [vmem:[%s1403] sm:$0xff]
    %s1405 = scalar_lea.vmem [#allocation1], 24
    %v1406 = vld [vmem:[%s1405] sm:$0xff]
    %v1407 = vmul.f32 %v1406, %v1395
    %1408 = vadd.xlane.f32.xlu0 %v1407
    %v1409 = vpop.xlane.xlu0 %1408
    %v1410 = vsub.f32 %v1404, %v1409
    %v1411 = vmul.f32 %v1410, %v1402
    %vm1412 = vcmask 1047558
    %vm1413 = vmand %vm1393, %vm1412
    %v1414 = vsel %vm1413, %v1411, 0.0
    %v1415 = vadd.f32 %v1406, %v1414
    %s1416 = scalar_lea.vmem [#allocation1], 24
    %1417 = vst [vmem:[%s1416] sm:$0xff] %v1415
    %vm1418 = vcmask 261368
    %s1419 = scalar_lea.vmem [#allocation1], 31
    %v1420 = vld [vmem:[%s1419] ss:$0 sm:$0xff]
    %s1421 = scalar_lea.vmem [#allocation0], 31
    %v1422 = vld [vmem:[%s1421] ss:$0 sm:$0xff]
    %v1423 = vmul.f32 %v1420, %v1420
    %1424 = vadd.xlane.f32.xlu0 %v1423
    %v1425 = vpop.xlane.xlu0 %1424
    %v1426 = vsub.f32 %v1422, %v1425
    %v1427 = vrsqrt.pop %v1426
    %s1428 = scalar_lea.vmem [#allocation0], 24
    %v1429 = vld [vmem:[%s1428] sm:$0xff]
    %s1430 = scalar_lea.vmem [#allocation1], 24
    %v1431 = vld [vmem:[%s1430] sm:$0xff]
    %v1432 = vmul.f32 %v1431, %v1420
    %1433 = vadd.xlane.f32.xlu0 %v1432
    %v1434 = vpop.xlane.xlu0 %1433
    %v1435 = vsub.f32 %v1429, %v1434
    %v1436 = vmul.f32 %v1435, %v1427
    %vm1437 = vcmask 1047559
    %vm1438 = vmand %vm1418, %vm1437
    %v1439 = vsel %vm1438, %v1436, 0.0
    %v1440 = vadd.f32 %v1431, %v1439
    %s1441 = scalar_lea.vmem [#allocation1], 24
    %1442 = vst [vmem:[%s1441] sm:$0xff] %v1440
    // Predicated region
    $region36: #{custom-call.2} parent=1 // pred_check
      _
    $region37: #{custom-call.2} parent=1 // pred_check_branch
      %1444 = sbr.rel (0) target = $region39
    $region38: #{custom-call.2} parent=1 // pred_region
      // Predicated region
      $region40: #{custom-call.2} parent=38 // pred_check
        _
      $region41: #{custom-call.2} parent=38 // pred_check_branch
        %1446 = sbr.rel (0) target = $region43
      $region42: #{custom-call.2} parent=38 // pred_region
        // Predicated region
        $region55: #{custom-call.2} parent=42 // pred_check
          _
        $region56: #{custom-call.2} parent=42 // pred_check_branch
          %1467 = sbr.rel (0) target = $region58
        $region57: #{custom-call.2} parent=42 // pred_region
          loop: start=0, step=1, limit=1
          $region59: #{custom-call.2} parent=57 // loop_pre_header
            _
          $region60: #{custom-call.2} parent=57 // loop_header
            %s1469 = sphi 0, %s1473
            %p1470 = scmp.ge.s32.totalorder %s1469, 1
            %s1474 = sphi [#allocation1], [#allocation1]
            %s1475 = sphi %s1, %s1
          $region61: #{custom-call.2} parent=57 // loop_header_branch
            %1472 = sbr.rel (%p1470) target = $region65
          $region62: #{custom-call.2} parent=57 // loop_body
            %v1476 = vld [vmem:[%s1474] sm:$0xff]
            %1477 = vst [vmem:[%s1475] sm:$0xff] %v1476
            %v1478 = vld [vmem:[%s1474 + $0x8] sm:$0xff]
            %1479 = vst [vmem:[%s1475 + $0x8] sm:$0xff] %v1478
            %v1480 = vld [vmem:[%s1474 + $0x10] sm:$0xff]
            %1481 = vst [vmem:[%s1475 + $0x10] sm:$0xff] %v1480
            %v1482 = vld [vmem:[%s1474 + $0x18] sm:$0xff]
            %1483 = vst [vmem:[%s1475 + $0x18] sm:$0xff] %v1482
          $region63: #{custom-call.2} parent=57 // loop_footer
            %s1473 = sadd.s32 1, %s1469
          $region64: #{custom-call.2} parent=57 // loop_footer_branch
            %1468 = sbr.rel target = $region60
          $region65: #{custom-call.2} parent=57 // loop_exit
            _
        $region58: #{custom-call.2} parent=42 // pred_fallthru
          _
        // Predicated region
        $region66: #{custom-call.2} parent=42 // pred_check
          _
        $region67: #{custom-call.2} parent=42 // pred_check_branch
          %1485 = sbr.rel target = $region69
        $region68: #{custom-call.2} parent=42 // pred_region
          _
        $region69: #{custom-call.2} parent=42 // pred_fallthru
          _
      $region43: #{custom-call.2} parent=38 // pred_fallthru
        _
      // Predicated region
      $region44: #{custom-call.2} parent=38 // pred_check
        _
      $region45: #{custom-call.2} parent=38 // pred_check_branch
        %1448 = sbr.rel target = $region47
      $region46: #{custom-call.2} parent=38 // pred_region
        loop: start=0, step=1, limit=1
        $region48: #{custom-call.2} parent=46 // loop_pre_header
          _
        $region49: #{custom-call.2} parent=46 // loop_header
          %s1451 = sphi 0, %s1455
          %p1452 = scmp.ge.s32.totalorder %s1451, 1
          %s1456 = sphi [#allocation1], [#allocation1]
          %s1457 = sphi %s1, %s1
        $region50: #{custom-call.2} parent=46 // loop_header_branch
          %1454 = sbr.rel (%p1452) target = $region54
        $region51: #{custom-call.2} parent=46 // loop_body
          %v1458 = vld [vmem:[%s1456] sm:$0xff]
          %1459 = vst [vmem:[%s1457] sm:$0xff] %v1458
          %v1460 = vld [vmem:[%s1456 + $0x8] sm:$0xff]
          %1461 = vst [vmem:[%s1457 + $0x8] sm:$0xff] %v1460
          %v1462 = vld [vmem:[%s1456 + $0x10] sm:$0xff]
          %1463 = vst [vmem:[%s1457 + $0x10] sm:$0xff] %v1462
          %v1464 = vld [vmem:[%s1456 + $0x18] sm:$0xff]
          %1465 = vst [vmem:[%s1457 + $0x18] sm:$0xff] %v1464
        $region52: #{custom-call.2} parent=46 // loop_footer
          %s1455 = sadd.s32 1, %s1451
        $region53: #{custom-call.2} parent=46 // loop_footer_branch
          %1450 = sbr.rel target = $region49
        $region54: #{custom-call.2} parent=46 // loop_exit
          _
      $region47: #{custom-call.2} parent=38 // pred_fallthru
        _
    $region39: #{custom-call.2} parent=1 // pred_fallthru
      _
    %1486 = vnop

// kernel: _forward_tuple.3
$region0: #{_forward_tuple.3}
  #allocation0 [shape = 'u32[]', space=smem, size = 0x4, offset = 0x4, fixed_abs, tag = 'smem constant byte address 0x4 - core index']
  #allocation1 [shape = 'u32[144,128]{1,0:T(1,128)}', space=vmem, size = 0x12000, scoped, tag = 'internal scratch']
  #allocation2 [shape = 'f32[1]{0:T(128)}', space=smem, size = 0x200, scoped, tag = 'scratch operand']
  #allocation3 [shape = 'f32[1]{0:T(128)S(6)}', space=smem, size = 0x200, scoped, tag = 'scoped memory for _forward_tuple.3']
  %s0 = inlined_call_operand.<no memory space> [shape: f32[1], index: 0, kind: input, shape index: {}]
  %s1 = inlined_call_operand.hbm [shape: f32[32,32], index: 1, kind: input, shape index: {}, may-alias: {1,2}]
  %s2 = inlined_call_operand.hbm [shape: f32[32,32], index: 2, kind: input, shape index: {}, may-alias: {1,2}]
  %s3 = inlined_call_operand.vmem [shape: f32[32,32], index: 3, kind: output, shape index: {0}]
  %s4 = inlined_call_operand.hbm [shape: f32[1], index: 4, kind: output, shape index: {1}]
  %5 = xla_tuple %s3, %s4
  %s6 = sld [smem:[#allocation0]]
  $region46: #{_forward_tuple.3} parent=0
    _
  %s8 = ssub.s32 1, %s6
  %s9 = scalar_select 0, %s8, %s6
  %10 = sst [smem:[#allocation3]] %s0
  $region1: #{_forward_tuple.3} parent=0
    #allocation4 [shape = 'u8[16384]{0}', space=vmem, size = 0x4000, scoped, tag = 'input window, operand 1, single buffered']
    #allocation5 [shape = 's32[1]{0}', space=sflag, size = 0x4, scoped, tag = 'scoped memory for _forward_tuple.3']
    #allocation6 [shape = 's32[1]{0}', space=sflag, size = 0x4, scoped, tag = 'scoped memory for _forward_tuple.3']
    #allocation7 [shape = 'u8[16384]{0}', space=vmem, size = 0x4000, scoped, tag = 'input window, operand 2, single buffered']
    #allocation8 [shape = 's32[1]{0}', space=sflag, size = 0x4, scoped, tag = 'scoped memory for _forward_tuple.3']
    #allocation9 [shape = 'u8[512]{0}', space=smem, size = 0x200, scoped, tag = 'output window, operand 1, single buffered']
    %11 = vsyncpa [#allocation5], 0
    %12 = vsyncpa [#allocation8], 0
    %13 = vsyncpa [#allocation6], 0
    // Predicated region
    $region2: #{_forward_tuple.3} parent=1 // pred_check
      _
    $region3: #{_forward_tuple.3} parent=1 // pred_check_branch
      %15 = sbr.rel (0) target = $region5
    $region4: #{_forward_tuple.3} parent=1 // pred_region
      _
    $region5: #{_forward_tuple.3} parent=1 // pred_fallthru
      _
    // Predicated region
    $region6: #{_forward_tuple.3} parent=1 // pred_check
      _
    $region7: #{_forward_tuple.3} parent=1 // pred_check_branch
      %17 = sbr.rel (0) target = $region9
    $region8: #{_forward_tuple.3} parent=1 // pred_region
      %s19 = ssub.s32 512, 512
      %20 = vsyncadd [#allocation5], %s19
      %s21 = sshll.u32 [#allocation4], 4
      %s22 = int_to_ptr.vmem [resolvable:$true] %s21
      %27 = dma.hbm_to_vmem [thread:$0]  %s1, 512, %s22, [#allocation5], 128, 128, 8
    $region9: #{_forward_tuple.3} parent=1 // pred_fallthru
      _
    // Predicated region
    $region10: #{_forward_tuple.3} parent=1 // pred_check
      _
    $region11: #{_forward_tuple.3} parent=1 // pred_check_branch
      %29 = sbr.rel (0) target = $region13
    $region12: #{_forward_tuple.3} parent=1 // pred_region
      %s31 = ssub.s32 512, 512
      %32 = vsyncadd [#allocation8], %s31
      %s33 = sshll.u32 [#allocation7], 4
      %s34 = int_to_ptr.vmem [resolvable:$true] %s33
      %39 = dma.hbm_to_vmem [thread:$0]  %s2, 512, %s34, [#allocation8], 128, 128, 8
    $region13: #{_forward_tuple.3} parent=1 // pred_fallthru
      _
    // Predicated region
    $region14: #{_forward_tuple.3} parent=1 // pred_check
      _
    $region15: #{_forward_tuple.3} parent=1 // pred_check_branch
      %41 = sbr.rel (0) target = $region17
    $region16: #{_forward_tuple.3} parent=1 // pred_region
      %42 = dma.done [#allocation5], 512
    $region17: #{_forward_tuple.3} parent=1 // pred_fallthru
      _
    // Predicated region
    $region18: #{_forward_tuple.3} parent=1 // pred_check
      _
    $region19: #{_forward_tuple.3} parent=1 // pred_check_branch
      %44 = sbr.rel (0) target = $region21
    $region20: #{_forward_tuple.3} parent=1 // pred_region
      %45 = dma.done [#allocation8], 512
    $region21: #{_forward_tuple.3} parent=1 // pred_fallthru
      _
    %p46 = scmp.eq.s32.totalorder 0, 0
    // Predicated region
    $region22: #{_forward_tuple.3} parent=1 // pred_check
      %p47 = pneg %p46
    $region23: #{_forward_tuple.3} parent=1 // pred_check_branch
      %49 = sbr.rel (%p47) target = $region25
    $region24: #{_forward_tuple.3} parent=1 // pred_region
      %s50 = scalar_lea.smem [#allocation2], 0
      %51 = sst [smem:[%s50]] 0.0
    $region25: #{_forward_tuple.3} parent=1 // pred_fallthru
      _
    %v52 = vld [vmem:[#allocation4] sm:$0xff]
    %v53 = vld [vmem:[#allocation4 + $0x8] sm:$0xff]
    %v54 = vld [vmem:[#allocation4 + $0x10] sm:$0xff]
    %v55 = vld [vmem:[#allocation4 + $0x18] sm:$0xff]
    %s56 = sld [smem:[#allocation3]]
    %v57 = vstv %s56
    %v58 = vmul.f32 %v57, 1.442695
    %v59 = vpow.pop %v58
    %s60 = vtos %v59
    %s61 = smul.f32 %s60, 0.03125
    %v62 = vld [vmem:[#allocation7] sm:$0xff]
    %v63 = vld [vmem:[#allocation7 + $0x8] sm:$0xff]
    %v64 = vld [vmem:[#allocation7 + $0x10] sm:$0xff]
    %v65 = vld [vmem:[#allocation7 + $0x18] sm:$0xff]
    %vm66 = vcmask 261120
    %v68 = vsel %vm66, %v52, 0
    %v71 = vsel %vm66, %v53, 0
    %v74 = vsel %vm66, %v54, 0
    %v77 = vsel %vm66, %v55, 0
    %v80 = vsel %vm66, %v62, 0
    %v83 = vsel %vm66, %v63, 0
    %v86 = vsel %vm66, %v64, 0
    %v89 = vsel %vm66, %v65, 0
    %91 = vmatprep.subr.mxu0 0.0
    %92 = vmatpush1.xpose.msra.mxu0 %v80
    %93 = vmatprep.subr.mxu0 0.0
    %94 = vmatpush1.xpose.msra.mxu0 %v83
    %95 = vmatprep.subr.mxu0 0.0
    %96 = vmatpush1.xpose.msra.mxu0 %v86
    %97 = vmatprep.subr.mxu0 0.0
    %98 = vmatpush1.xpose.msra.mxu0 %v89
    %99 = vmatprep.subr.mxu0 0.0
    %100 = vmatpush1.xpose.msra.mxu0 0.0
    %101 = vmatprep.subr.mxu0 0.0
    %102 = vmatpush1.xpose.msra.mxu0 0.0
    %103 = vmatprep.subr.mxu0 0.0
    %104 = vmatpush1.xpose.msra.mxu0 0.0
    %105 = vmatprep.subr.mxu0 0.0
    %106 = vmatpush1.xpose.msra.mxu0 0.0
    %107 = vmatprep.subr.mxu0 0.0
    %108 = vmatpush1.xpose.msra.mxu0 0.0
    %109 = vmatprep.subr.mxu0 0.0
    %110 = vmatpush1.xpose.msra.mxu0 0.0
    %111 = vmatprep.subr.mxu0 0.0
    %112 = vmatpush1.xpose.msra.mxu0 0.0
    %113 = vmatprep.subr.mxu0 0.0
    %114 = vmatpush1.xpose.msra.mxu0 0.0
    %115 = vmatprep.subr.mxu0 0.0
    %116 = vmatpush1.xpose.msra.mxu0 0.0
    %117 = vmatprep.subr.mxu0 0.0
    %118 = vmatpush1.xpose.msra.mxu0 0.0
    %119 = vmatprep.subr.mxu0 0.0
    %120 = vmatpush1.xpose.msra.mxu0 0.0
    %121 = vmatprep.subr.mxu0 0.0
    %122 = vmatpush1.xpose.msra.mxu0 0.0
    %123 = vmatprep.subr.mxu0 0.0
    %124 = vmatpush1.xpose.msra.mxu0 0.0
    %125 = vmatprep.subr.mxu0 0.0
    %126 = vmatpush1.xpose.msra.mxu0 0.0
    %127 = vmatprep.subr.mxu0 0.0
    %128 = vmatpush1.xpose.msra.mxu0 0.0
    %129 = vmatprep.subr.mxu0 0.0
    %130 = vmatpush1.xpose.msra.mxu0 0.0
    %131 = vmatprep.subr.mxu0 0.0
    %132 = vmatpush1.xpose.msra.mxu0 0.0
    %133 = vmatprep.subr.mxu0 0.0
    %134 = vmatpush1.xpose.msra.mxu0 0.0
    %135 = vmatprep.subr.mxu0 0.0
    %136 = vmatpush1.xpose.msra.mxu0 0.0
    %137 = vmatprep.subr.mxu0 0.0
    %138 = vmatpush1.xpose.msra.mxu0 0.0
    %139 = vmatprep.subr.mxu0 0.0
    %140 = vmatpush1.xpose.msra.mxu0 0.0
    %141 = vmatprep.subr.mxu0 0.0
    %142 = vmatpush1.xpose.msra.mxu0 0.0
    %143 = vmatprep.subr.mxu0 0.0
    %144 = vmatpush1.xpose.msra.mxu0 0.0
    %145 = vmatprep.subr.mxu0 0.0
    %146 = vmatpush1.xpose.msra.mxu0 0.0
    %147 = vmatprep.subr.mxu0 0.0
    %148 = vmatpush1.xpose.msra.mxu0 0.0
    %149 = vmatprep.subr.mxu0 0.0
    %150 = vmatpush1.xpose.msra.mxu0 0.0
    %151 = vmatprep.subr.mxu0 0.0
    %152 = vmatpush1.xpose.msra.mxu0 0.0
    %153 = vmatprep.subr.mxu0 0.0
    %154 = vmatpush1.xpose.msra.mxu0 0.0
    %155 = vmatprep.mubr.f32.mxu0 0.0
    %156 = vmatmul.mubr.f32.gmra.mrb[0].mxu0 %v68
    %v157 = vpop.f32.mrb[0].mxu0
    %v158 = vadd.f32 0.0, %v157
    %v159 = vpop.f32.mrb[0].mxu0
    %160 = vmatprep.mubr.f32.mxu0 0.0
    %161 = vmatmul.mubr.f32.gmra.mrb[0].mxu0 %v71
    %v162 = vpop.f32.mrb[0].mxu0
    %v163 = vadd.f32 0.0, %v162
    %v164 = vpop.f32.mrb[0].mxu0
    %165 = vmatprep.mubr.f32.mxu0 0.0
    %166 = vmatmul.mubr.f32.gmra.mrb[0].mxu0 %v74
    %v167 = vpop.f32.mrb[0].mxu0
    %v168 = vadd.f32 0.0, %v167
    %v169 = vpop.f32.mrb[0].mxu0
    %170 = vmatprep.mubr.f32.mxu0 0.0
    %171 = vmatmul.mubr.f32.gmra.mrb[0].mxu0 %v77
    %v172 = vpop.f32.mrb[0].mxu0
    %v173 = vadd.f32 0.0, %v172
    %v174 = vpop.f32.mrb[0].mxu0
    %175 = vdwg.mxu0
    %v176 = vstv %s61
    %v177 = vmul.f32 %v158, %v176
    %v178 = vmul.f32 %v163, %v176
    %v179 = vmul.f32 %v168, %v176
    %v180 = vmul.f32 %v173, %v176
    %181 = vst.msk [vmem:[%s3] sm:$0xff] %vm66, %v177
    %182 = vst.msk [vmem:[%s3 + $0x8] sm:$0xff] %vm66, %v178
    %183 = vst.msk [vmem:[%s3 + $0x10] sm:$0xff] %vm66, %v179
    %184 = vst.msk [vmem:[%s3 + $0x18] sm:$0xff] %vm66, %v180
    %s185 = smul.u32 0, 32
    %v186 = vlaneseq
    %v187 = vshrl.u32 %v186, 7
    %v188 = vadd.s32 %v187, 8
    %v189 = vadd.s32 %v187, 16
    %v190 = vadd.s32 %v187, 24
    %v191 = vstv %s185
    %v192 = vadd.s32 %v191, %v187
    %v193 = vadd.s32 %v191, %v188
    %v194 = vadd.s32 %v191, %v189
    %v195 = vadd.s32 %v191, %v190
    %vm196 = vcmp.lt.s32.totalorder %v192, 32
    %vm197 = vcmp.lt.s32.totalorder %v193, 32
    %vm198 = vcmp.lt.s32.totalorder %v194, 32
    %vm199 = vcmp.lt.s32.totalorder %v195, 32
    %v200 = vsel %vm196, 1, 0
    %v201 = vsel %vm197, 1, 0
    %v202 = vsel %vm198, 1, 0
    %v203 = vsel %vm199, 1, 0
    %vm204 = vcmp.eq.s32.totalorder %v200, 1
    %vm205 = vcmp.eq.s32.totalorder %v201, 1
    %vm206 = vcmp.eq.s32.totalorder %v202, 1
    %vm207 = vcmp.eq.s32.totalorder %v203, 1
    %v208 = vsel %vm204, %v52, 0.0
    %v209 = vsel %vm205, %v53, 0.0
    %v210 = vsel %vm206, %v54, 0.0
    %v211 = vsel %vm207, %v55, 0.0
    %s212 = sld [smem:[#allocation2]]
    %v213 = vmul.f32 %v208, %v208
    %v214 = vmul.f32 %v209, %v209
    %v215 = vmul.f32 %v210, %v210
    %v216 = vmul.f32 %v211, %v211
    %v217 = vsel %vm66, %v213, 0.0
    %v218 = vsel %vm66, %v214, 0.0
    %v219 = vadd.f32 %v217, %v218
    %v220 = vsel %vm66, %v215, 0.0
    %v221 = vadd.f32 %v219, %v220
    %v222 = vsel %vm66, %v216, 0.0
    %v223 = vadd.f32 %v221, %v222
    %224 = vadd.xlane.f32.xlu0 %v223
    %v225 = vpop.xlane.xlu0 %224
    %v226 = vrot.slane %v225, 4
    %v227 = vadd.f32 %v225, %v226
    %v228 = vrot.slane %v227, 2
    %v229 = vadd.f32 %v227, %v228
    %v230 = vrot.slane %v229, 1
    %v231 = vadd.f32 %v229, %v230
    %s232 = vtos %v231
    %s233 = smul.f32 %s61, %s232
    %s234 = sadd.f32 %s212, %s233
    %s235 = scalar_lea.smem [#allocation2], 0
    %236 = sst [smem:[%s235]] %s234
    // Predicated region
    $region26: #{_forward_tuple.3} parent=1 // pred_check
      %p237 = pneg %p46
    $region27: #{_forward_tuple.3} parent=1 // pred_check_branch
      %239 = sbr.rel (%p237) target = $region29
    $region28: #{_forward_tuple.3} parent=1 // pred_region
      %s240 = sld [smem:[#allocation2]]
      %s241 = ssub.f32 %s240, 32.0
      %s242 = smul.f32 %s241, -1.0
      %s243 = scalar_lea.smem [#allocation9], 0
      %244 = sst [smem:[%s243]] %s242
    $region29: #{_forward_tuple.3} parent=1 // pred_fallthru
      _
    // Predicated region
    $region30: #{_forward_tuple.3} parent=1 // pred_check
      _
    $region31: #{_forward_tuple.3} parent=1 // pred_check_branch
      %246 = sbr.rel (0) target = $region33
    $region32: #{_forward_tuple.3} parent=1 // pred_region
      _
    $region33: #{_forward_tuple.3} parent=1 // pred_fallthru
      _
    // Predicated region
    $region34: #{_forward_tuple.3} parent=1 // pred_check
      _
    $region35: #{_forward_tuple.3} parent=1 // pred_check_branch
      %248 = sbr.rel (0) target = $region37
    $region36: #{_forward_tuple.3} parent=1 // pred_region
      %s250 = ssub.s32 16, 16
      %251 = vsyncadd [#allocation6], %s250
      %254 = dma.smem_to_hbm [#allocation9], 16, %s4, [#allocation6]
    $region37: #{_forward_tuple.3} parent=1 // pred_fallthru
      _
    // Predicated region
    $region38: #{_forward_tuple.3} parent=1 // pred_check
      _
    $region39: #{_forward_tuple.3} parent=1 // pred_check_branch
      %256 = sbr.rel (0) target = $region41
    $region40: #{_forward_tuple.3} parent=1 // pred_region
      _
    $region41: #{_forward_tuple.3} parent=1 // pred_fallthru
      _
    // Predicated region
    $region42: #{_forward_tuple.3} parent=1 // pred_check
      _
    $region43: #{_forward_tuple.3} parent=1 // pred_check_branch
      %258 = sbr.rel (0) target = $region45
    $region44: #{_forward_tuple.3} parent=1 // pred_region
      %259 = dma.done [#allocation6], 16
    $region45: #{_forward_tuple.3} parent=1 // pred_fallthru
      _
    %260 = sfence
    %261 = vsyncpa [#allocation5], 1
    %262 = vsyncpa [#allocation8], 1
    %263 = vsyncpa [#allocation6], 1

// kernel: _forward_tuple.4
$region0: #{_forward_tuple.4}
  #allocation0 [shape = 'u32[]', space=smem, size = 0x4, offset = 0x4, fixed_abs, tag = 'smem constant byte address 0x4 - core index']
  #allocation1 [shape = 'u32[144,128]{1,0:T(1,128)}', space=vmem, size = 0x12000, scoped, tag = 'internal scratch']
  %s0 = inlined_call_operand.vmem [shape: f32[32,128], index: 0, kind: input, shape index: {}]
  %s1 = inlined_call_operand.vmem [shape: f32[128,128], index: 1, kind: input, shape index: {}]
  %s2 = inlined_call_operand.vmem [shape: f32[32,128], index: 2, kind: output, shape index: {}]
  %s3 = sld [smem:[#allocation0]]
  $region41: #{_forward_tuple.4} parent=0
    _
  %s5 = ssub.s32 1, %s3
  %s6 = scalar_select 0, %s5, %s3
  loop: start=0, step=1, limit=4
  $region2: #{_forward_tuple.4} parent=0 // loop_pre_header
    _
  $region3: #{_forward_tuple.4} parent=0 // loop_header
    %s8 = sphi 0, %s12
    %p9 = scmp.ge.s32.totalorder %s8, 4
    %s18 = sphi 0, %s20
    %s21 = sphi 0, %s18
    %s22 = sphi 0, %s21
    %s38 = sphi 0, %s22
    %s42 = sphi 0, %s42
    %s44 = sphi 0, %s42
    %s45 = sphi 0, %s44
    %s59 = sphi 0, %s45
    %s65 = sphi 0, %s67
    %s68 = sphi 0, %s65
    %s69 = sphi 0, %s68
    %s85 = sphi 0, %s69
  $region4: #{_forward_tuple.4} parent=0 // loop_header_branch
    %11 = sbr.rel (%p9) target = $region8
  $region5: #{_forward_tuple.4} parent=0 // loop_body
    %s13 = ssub.s32 %s8, 1
    %s14 = ssub.s32 %s8, 2
    %s15 = sadd.s32 %s8, 1
    %s16 = ssub.s32 %s8, %s15
    %p17 = scmp.eq.s32.totalorder %s16, 0
    %s19 = sadd.s32 %s18, 1
    %s20 = scalar_select %p17, %s18, %s19
    %p23 = pneg %p17
    %p24 = scmp.eq.s32.totalorder %s8, 1
    %p25 = por %p23, %p24
    %p26 = scmp.ne.s32.totalorder %s18, %s21
    %p27 = scmp.eq.s32.totalorder %s8, 0
    %p28 = por %p26, %p27
    %p29 = scmp.ne.s32.totalorder %s18, %s21
    %p30 = scmp.eq.s32.totalorder %s13, 1
    %p31 = por %p29, %p30
    %p32 = scmp.ne.s32.totalorder %s21, %s22
    %p33 = scmp.eq.s32.totalorder %s13, 0
    %p34 = por %p32, %p33
    %p35 = scmp.ne.s32.totalorder %s21, %s22
    %p36 = scmp.eq.s32.totalorder %s14, 1
    %p37 = por %p35, %p36
    %p39 = scmp.ne.s32.totalorder %s22, %s38
    %p40 = scmp.eq.s32.totalorder %s14, 0
    %p41 = por %p39, %p40
    %s43 = sadd.s32 %s42, 1
    %p46 = scmp.eq.s32.totalorder %s8, 1
    %p47 = scmp.ne.s32.totalorder %s42, %s44
    %p48 = scmp.eq.s32.totalorder %s8, 0
    %p49 = por %p47, %p48
    %p50 = scmp.ne.s32.totalorder %s42, %s44
    %p51 = scmp.eq.s32.totalorder %s13, 1
    %p52 = por %p50, %p51
    %p53 = scmp.ne.s32.totalorder %s44, %s45
    %p54 = scmp.eq.s32.totalorder %s13, 0
    %p55 = por %p53, %p54
    %p56 = scmp.ne.s32.totalorder %s44, %s45
    %p57 = scmp.eq.s32.totalorder %s14, 1
    %p58 = por %p56, %p57
    %p60 = scmp.ne.s32.totalorder %s45, %s59
    %p61 = scmp.eq.s32.totalorder %s14, 0
    %p62 = por %p60, %p61
    %s63 = ssub.s32 %s8, %s15
    %p64 = scmp.eq.s32.totalorder %s63, 0
    %s66 = sadd.s32 %s65, 1
    %s67 = scalar_select %p64, %s65, %s66
    %p70 = pneg %p64
    %p71 = scmp.eq.s32.totalorder %s8, 1
    %p72 = por %p70, %p71
    %p73 = scmp.ne.s32.totalorder %s65, %s68
    %p74 = scmp.eq.s32.totalorder %s8, 0
    %p75 = por %p73, %p74
    %p76 = scmp.ne.s32.totalorder %s65, %s68
    %p77 = scmp.eq.s32.totalorder %s13, 1
    %p78 = por %p76, %p77
    %p79 = scmp.ne.s32.totalorder %s68, %s69
    %p80 = scmp.eq.s32.totalorder %s13, 0
    %p81 = por %p79, %p80
    %p82 = scmp.ne.s32.totalorder %s68, %s69
    %p83 = scmp.eq.s32.totalorder %s14, 1
    %p84 = por %p82, %p83
    %p86 = scmp.ne.s32.totalorder %s69, %s85
    %p87 = scmp.eq.s32.totalorder %s14, 0
    %p88 = por %p86, %p87
    %p89 = scmp.le.s32.totalorder 1, %s8
    %p90 = scmp.lt.s32.totalorder %s8, 3
    %p91 = pnand %p89, %p90
    %p92 = pneg %p91
    // Predicated region
    $region9: #{_forward_tuple.4} parent=5 // pred_check
      _
    $region10: #{_forward_tuple.4} parent=5 // pred_check_branch
      %94 = sbr.rel (%p91) target = $region12
    $region11: #{_forward_tuple.4} parent=5 // pred_region
      %s95 = ssub.s32 %s8, 1
      // Predicated region
      $region13: #{_forward_tuple.4} parent=11 // pred_check
        %p96 = pneg %p55
      $region14: #{_forward_tuple.4} parent=11 // pred_check_branch
        %98 = sbr.rel (%p96) target = $region16
      $region15: #{_forward_tuple.4} parent=11 // pred_region
        _
      $region16: #{_forward_tuple.4} parent=11 // pred_fallthru
        _
    $region12: #{_forward_tuple.4} parent=5 // pred_fallthru
      _
    %p99 = scmp.lt.s32.totalorder %s8, 2
    // Predicated region
    $region17: #{_forward_tuple.4} parent=5 // pred_check
      %p100 = pneg %p99
    $region18: #{_forward_tuple.4} parent=5 // pred_check_branch
      %102 = sbr.rel (%p100) target = $region20
    $region19: #{_forward_tuple.4} parent=5 // pred_region
      // Predicated region
      $region21: #{_forward_tuple.4} parent=19 // pred_check
        %p103 = pneg %p28
      $region22: #{_forward_tuple.4} parent=19 // pred_check_branch
        %105 = sbr.rel (%p103) target = $region24
      $region23: #{_forward_tuple.4} parent=19 // pred_region
        %s106 = smul.u32 2, %s8
        %p107 = scmp.lt.s32.totalorder %s106, 3
        %s108 = scalar_select %p107, %s106, 3
        %s109 = smul.addr %s108, 8
        %s110 = scalar_lea.vmem %s0, %s109
        %s111 = smul.u32 2, %s8
      $region24: #{_forward_tuple.4} parent=19 // pred_fallthru
        _
    $region20: #{_forward_tuple.4} parent=5 // pred_fallthru
      _
    %p112 = scmp.le.s32.totalorder 1, %s8
    %p113 = scmp.lt.s32.totalorder %s8, 3
    %p114 = pnand %p112, %p113
    %p115 = pneg %p114
    // Predicated region
    $region25: #{_forward_tuple.4} parent=5 // pred_check
      _
    $region26: #{_forward_tuple.4} parent=5 // pred_check_branch
      %117 = sbr.rel (%p114) target = $region28
    $region27: #{_forward_tuple.4} parent=5 // pred_region
      %s118 = ssub.s32 %s8, 1
      %s119 = smul.u32 2, %s13
      %p120 = scmp.lt.s32.totalorder %s119, 3
      %s121 = scalar_select %p120, %s119, 3
      %s122 = smul.addr %s121, 8
      %s123 = scalar_lea.vmem %s0, %s122
      %p124 = pneg %p34
      %p125 = pneg %p31
      %p126 = pneg %p55
      %p127 = pneg %p52
      %p128 = pneg %p81
      %p129 = pneg %p78
      %s130 = smul.u32 2, %s13
      %p131 = scmp.lt.s32.totalorder %s130, 3
      %s132 = scalar_select %p131, %s130, 3
      %s133 = smul.addr %s132, 8
      %s134 = scalar_lea.vmem %s2, %s133
      %s135 = smul.u32 2, %s13
      %p136 = scmp.lt.s32.totalorder %s135, 3
      %s137 = scalar_select %p136, %s135, 3
      %s138 = smul.addr %s137, 8
      %s139 = scalar_lea.vmem %s0, %s138
      %s140 = smul.u32 2, %s13
      %s141 = smul.u32 2, %s13
      %p142 = scmp.lt.s32.totalorder %s141, 3
      %s143 = scalar_select %p142, %s141, 3
      %s144 = smul.addr %s143, 8
      %s145 = scalar_lea.vmem %s2, %s144
      %s146 = smul.u32 2, %s13
      %v147 = vld [vmem:[%s139] sm:$0xff]
      %v148 = vld [vmem:[%s139 + $0x8] sm:$0xff]
      %v149 = vld [vmem:[%s1] sm:$0xff]
      %v150 = vld [vmem:[%s1 + $0x8] sm:$0xff]
      %v151 = vld [vmem:[%s1 + $0x10] sm:$0xff]
      %v152 = vld [vmem:[%s1 + $0x18] sm:$0xff]
      %v153 = vld [vmem:[%s1 + $0x20] sm:$0xff]
      %v154 = vld [vmem:[%s1 + $0x28] sm:$0xff]
      %v155 = vld [vmem:[%s1 + $0x30] sm:$0xff]
      %v156 = vld [vmem:[%s1 + $0x38] sm:$0xff]
      %v157 = vld [vmem:[%s1 + $0x40] sm:$0xff]
      %v158 = vld [vmem:[%s1 + $0x48] sm:$0xff]
      %v159 = vld [vmem:[%s1 + $0x50] sm:$0xff]
      %v160 = vld [vmem:[%s1 + $0x58] sm:$0xff]
      %v161 = vld [vmem:[%s1 + $0x60] sm:$0xff]
      %v162 = vld [vmem:[%s1 + $0x68] sm:$0xff]
      %v163 = vld [vmem:[%s1 + $0x70] sm:$0xff]
      %v164 = vld [vmem:[%s1 + $0x78] sm:$0xff]
      %165 = vmatprep.subr.mxu0 0.0
      %166 = vmatpush1.msra.mxu0 %v149
      %167 = vmatprep.subr.mxu0 0.0
      %168 = vmatpush1.msra.mxu0 %v150
      %169 = vmatprep.subr.mxu0 0.0
      %170 = vmatpush1.msra.mxu0 %v151
      %171 = vmatprep.subr.mxu0 0.0
      %172 = vmatpush1.msra.mxu0 %v152
      %173 = vmatprep.subr.mxu0 0.0
      %174 = vmatpush1.msra.mxu0 %v153
      %175 = vmatprep.subr.mxu0 0.0
      %176 = vmatpush1.msra.mxu0 %v154
      %177 = vmatprep.subr.mxu0 0.0
      %178 = vmatpush1.msra.mxu0 %v155
      %179 = vmatprep.subr.mxu0 0.0
      %180 = vmatpush1.msra.mxu0 %v156
      %181 = vmatprep.subr.mxu0 0.0
      %182 = vmatpush1.msra.mxu0 %v157
      %183 = vmatprep.subr.mxu0 0.0
      %184 = vmatpush1.msra.mxu0 %v158
      %185 = vmatprep.subr.mxu0 0.0
      %186 = vmatpush1.msra.mxu0 %v159
      %187 = vmatprep.subr.mxu0 0.0
      %188 = vmatpush1.msra.mxu0 %v160
      %189 = vmatprep.subr.mxu0 0.0
      %190 = vmatpush1.msra.mxu0 %v161
      %191 = vmatprep.subr.mxu0 0.0
      %192 = vmatpush1.msra.mxu0 %v162
      %193 = vmatprep.subr.mxu0 0.0
      %194 = vmatpush1.msra.mxu0 %v163
      %195 = vmatprep.subr.mxu0 0.0
      %196 = vmatpush1.msra.mxu0 %v164
      %197 = vmatprep.subr.mxu0 0.0
      %198 = vmatpush1.msra.mxu0 0.0
      %199 = vmatprep.subr.mxu0 0.0
      %200 = vmatpush1.msra.mxu0 0.0
      %201 = vmatprep.subr.mxu0 0.0
      %202 = vmatpush1.msra.mxu0 0.0
      %203 = vmatprep.subr.mxu0 0.0
      %204 = vmatpush1.msra.mxu0 0.0
      %205 = vmatprep.subr.mxu0 0.0
      %206 = vmatpush1.msra.mxu0 0.0
      %207 = vmatprep.subr.mxu0 0.0
      %208 = vmatpush1.msra.mxu0 0.0
      %209 = vmatprep.subr.mxu0 0.0
      %210 = vmatpush1.msra.mxu0 0.0
      %211 = vmatprep.subr.mxu0 0.0
      %212 = vmatpush1.msra.mxu0 0.0
      %213 = vmatprep.subr.mxu0 0.0
      %214 = vmatpush1.msra.mxu0 0.0
      %215 = vmatprep.subr.mxu0 0.0
      %216 = vmatpush1.msra.mxu0 0.0
      %217 = vmatprep.subr.mxu0 0.0
      %218 = vmatpush1.msra.mxu0 0.0
      %219 = vmatprep.subr.mxu0 0.0
      %220 = vmatpush1.msra.mxu0 0.0
      %221 = vmatprep.subr.mxu0 0.0
      %222 = vmatpush1.msra.mxu0 0.0
      %223 = vmatprep.subr.mxu0 0.0
      %224 = vmatpush1.msra.mxu0 0.0
      %225 = vmatprep.subr.mxu0 0.0
      %226 = vmatpush1.msra.mxu0 0.0
      %227 = vmatprep.subr.mxu0 0.0
      %228 = vmatpush1.msra.mxu0 0.0
      %229 = vmatprep.mubr.f32.mxu0 0.0
      %230 = vmatmul.mubr.f32.gmra.mrb[0].mxu0 %v147
      %v231 = vpop.f32.mrb[0].mxu0
      %v232 = vadd.f32 0.0, %v231
      %v233 = vpop.f32.mrb[0].mxu0
      %234 = vmatprep.mubr.f32.mxu0 0.0
      %235 = vmatmul.mubr.f32.gmra.mrb[0].mxu0 %v148
      %v236 = vpop.f32.mrb[0].mxu0
      %v237 = vadd.f32 0.0, %v236
      %v238 = vpop.f32.mrb[0].mxu0
      %239 = vdwg.mxu0
      %240 = vst [vmem:[%s145] sm:$0xff] %v232
      %241 = vst [vmem:[%s145 + $0x8] sm:$0xff] %v237
      %s242 = smul.u32 2, %s13
      %p243 = scmp.lt.s32.totalorder %s242, 3
      %s244 = scalar_select %p243, %s242, 3
      %s245 = smul.addr %s244, 8
      %s246 = scalar_lea.vmem %s2, %s245
      // Predicated region
      $region29: #{_forward_tuple.4} parent=27 // pred_check
        %p247 = pneg %p78
      $region30: #{_forward_tuple.4} parent=27 // pred_check_branch
        %249 = sbr.rel (%p247) target = $region32
      $region31: #{_forward_tuple.4} parent=27 // pred_region
        %s250 = smul.u32 2, %s13
      $region32: #{_forward_tuple.4} parent=27 // pred_fallthru
        _
    $region28: #{_forward_tuple.4} parent=5 // pred_fallthru
      _
    %p251 = scmp.le.s32.totalorder 2, %s8
    // Predicated region
    $region33: #{_forward_tuple.4} parent=5 // pred_check
      %p252 = pneg %p251
    $region34: #{_forward_tuple.4} parent=5 // pred_check_branch
      %254 = sbr.rel (%p252) target = $region36
    $region35: #{_forward_tuple.4} parent=5 // pred_region
      %s255 = ssub.s32 %s8, 2
      // Predicated region
      $region37: #{_forward_tuple.4} parent=35 // pred_check
        %p256 = pneg %p84
      $region38: #{_forward_tuple.4} parent=35 // pred_check_branch
        %258 = sbr.rel (%p256) target = $region40
      $region39: #{_forward_tuple.4} parent=35 // pred_region
        %s259 = smul.u32 2, %s14
        %p260 = scmp.lt.s32.totalorder %s259, 3
        %s261 = scalar_select %p260, %s259, 3
        %s262 = smul.addr %s261, 8
        %s263 = scalar_lea.vmem %s2, %s262
      $region40: #{_forward_tuple.4} parent=35 // pred_fallthru
        _
    $region36: #{_forward_tuple.4} parent=5 // pred_fallthru
      _
  $region6: #{_forward_tuple.4} parent=0 // loop_footer
    %s12 = sadd.s32 1, %s8
  $region7: #{_forward_tuple.4} parent=0 // loop_footer_branch
    %7 = sbr.rel target = $region3
  $region8: #{_forward_tuple.4} parent=0 // loop_exit
    _

// kernel: _forward_tuple.5
$region0: #{_forward_tuple.5}
  #allocation0 [shape = 'u32[]', space=smem, size = 0x4, offset = 0x4, fixed_abs, tag = 'smem constant byte address 0x4 - core index']
  #allocation1 [shape = 'u32[144,128]{1,0:T(1,128)}', space=vmem, size = 0x12000, scoped, tag = 'internal scratch']
  %s0 = inlined_call_operand.vmem [shape: f32[16,128], index: 0, kind: input, shape index: {}]
  %s1 = inlined_call_operand.vmem [shape: f32[128,128], index: 1, kind: input, shape index: {}]
  %s2 = inlined_call_operand.vmem [shape: f32[16,128], index: 2, kind: output, shape index: {}]
  %s3 = sld [smem:[#allocation0]]
  $region18: #{_forward_tuple.5} parent=0
    _
  %s5 = ssub.s32 1, %s3
  %s6 = scalar_select 0, %s5, %s3
  // Predicated region
  $region2: #{_forward_tuple.5} parent=0 // pred_check
    _
  $region3: #{_forward_tuple.5} parent=0 // pred_check_branch
    %8 = sbr.rel (0) target = $region5
  $region4: #{_forward_tuple.5} parent=0 // pred_region
    _
  $region5: #{_forward_tuple.5} parent=0 // pred_fallthru
    _
  // Predicated region
  $region6: #{_forward_tuple.5} parent=0 // pred_check
    _
  $region7: #{_forward_tuple.5} parent=0 // pred_check_branch
    %10 = sbr.rel (0) target = $region9
  $region8: #{_forward_tuple.5} parent=0 // pred_region
    _
  $region9: #{_forward_tuple.5} parent=0 // pred_fallthru
    _
  %v11 = vld [vmem:[%s0] sm:$0xff]
  %v12 = vld [vmem:[%s0 + $0x8] sm:$0xff]
  %v13 = vld [vmem:[%s1] sm:$0xff]
  %v14 = vld [vmem:[%s1 + $0x8] sm:$0xff]
  %v15 = vld [vmem:[%s1 + $0x10] sm:$0xff]
  %v16 = vld [vmem:[%s1 + $0x18] sm:$0xff]
  %v17 = vld [vmem:[%s1 + $0x20] sm:$0xff]
  %v18 = vld [vmem:[%s1 + $0x28] sm:$0xff]
  %v19 = vld [vmem:[%s1 + $0x30] sm:$0xff]
  %v20 = vld [vmem:[%s1 + $0x38] sm:$0xff]
  %v21 = vld [vmem:[%s1 + $0x40] sm:$0xff]
  %v22 = vld [vmem:[%s1 + $0x48] sm:$0xff]
  %v23 = vld [vmem:[%s1 + $0x50] sm:$0xff]
  %v24 = vld [vmem:[%s1 + $0x58] sm:$0xff]
  %v25 = vld [vmem:[%s1 + $0x60] sm:$0xff]
  %v26 = vld [vmem:[%s1 + $0x68] sm:$0xff]
  %v27 = vld [vmem:[%s1 + $0x70] sm:$0xff]
  %v28 = vld [vmem:[%s1 + $0x78] sm:$0xff]
  %29 = vmatprep.subr.mxu0 0.0
  %30 = vmatpush1.msra.mxu0 %v13
  %31 = vmatprep.subr.mxu0 0.0
  %32 = vmatpush1.msra.mxu0 %v14
  %33 = vmatprep.subr.mxu0 0.0
  %34 = vmatpush1.msra.mxu0 %v15
  %35 = vmatprep.subr.mxu0 0.0
  %36 = vmatpush1.msra.mxu0 %v16
  %37 = vmatprep.subr.mxu0 0.0
  %38 = vmatpush1.msra.mxu0 %v17
  %39 = vmatprep.subr.mxu0 0.0
  %40 = vmatpush1.msra.mxu0 %v18
  %41 = vmatprep.subr.mxu0 0.0
  %42 = vmatpush1.msra.mxu0 %v19
  %43 = vmatprep.subr.mxu0 0.0
  %44 = vmatpush1.msra.mxu0 %v20
  %45 = vmatprep.subr.mxu0 0.0
  %46 = vmatpush1.msra.mxu0 %v21
  %47 = vmatprep.subr.mxu0 0.0
  %48 = vmatpush1.msra.mxu0 %v22
  %49 = vmatprep.subr.mxu0 0.0
  %50 = vmatpush1.msra.mxu0 %v23
  %51 = vmatprep.subr.mxu0 0.0
  %52 = vmatpush1.msra.mxu0 %v24
  %53 = vmatprep.subr.mxu0 0.0
  %54 = vmatpush1.msra.mxu0 %v25
  %55 = vmatprep.subr.mxu0 0.0
  %56 = vmatpush1.msra.mxu0 %v26
  %57 = vmatprep.subr.mxu0 0.0
  %58 = vmatpush1.msra.mxu0 %v27
  %59 = vmatprep.subr.mxu0 0.0
  %60 = vmatpush1.msra.mxu0 %v28
  %61 = vmatprep.subr.mxu0 0.0
  %62 = vmatpush1.msra.mxu0 0.0
  %63 = vmatprep.subr.mxu0 0.0
  %64 = vmatpush1.msra.mxu0 0.0
  %65 = vmatprep.subr.mxu0 0.0
  %66 = vmatpush1.msra.mxu0 0.0
  %67 = vmatprep.subr.mxu0 0.0
  %68 = vmatpush1.msra.mxu0 0.0
  %69 = vmatprep.subr.mxu0 0.0
  %70 = vmatpush1.msra.mxu0 0.0
  %71 = vmatprep.subr.mxu0 0.0
  %72 = vmatpush1.msra.mxu0 0.0
  %73 = vmatprep.subr.mxu0 0.0
  %74 = vmatpush1.msra.mxu0 0.0
  %75 = vmatprep.subr.mxu0 0.0
  %76 = vmatpush1.msra.mxu0 0.0
  %77 = vmatprep.subr.mxu0 0.0
  %78 = vmatpush1.msra.mxu0 0.0
  %79 = vmatprep.subr.mxu0 0.0
  %80 = vmatpush1.msra.mxu0 0.0
  %81 = vmatprep.subr.mxu0 0.0
  %82 = vmatpush1.msra.mxu0 0.0
  %83 = vmatprep.subr.mxu0 0.0
  %84 = vmatpush1.msra.mxu0 0.0
  %85 = vmatprep.subr.mxu0 0.0
  %86 = vmatpush1.msra.mxu0 0.0
  %87 = vmatprep.subr.mxu0 0.0
  %88 = vmatpush1.msra.mxu0 0.0
  %89 = vmatprep.subr.mxu0 0.0
  %90 = vmatpush1.msra.mxu0 0.0
  %91 = vmatprep.subr.mxu0 0.0
  %92 = vmatpush1.msra.mxu0 0.0
  %93 = vmatprep.mubr.f32.mxu0 0.0
  %94 = vmatmul.mubr.f32.gmra.mrb[0].mxu0 %v11
  %v95 = vpop.f32.mrb[0].mxu0
  %v96 = vadd.f32 0.0, %v95
  %v97 = vpop.f32.mrb[0].mxu0
  %98 = vmatprep.mubr.f32.mxu0 0.0
  %99 = vmatmul.mubr.f32.gmra.mrb[0].mxu0 %v12
  %v100 = vpop.f32.mrb[0].mxu0
  %v101 = vadd.f32 0.0, %v100
  %v102 = vpop.f32.mrb[0].mxu0
  %103 = vdwg.mxu0
  %104 = vst [vmem:[%s2] sm:$0xff] %v96
  %105 = vst [vmem:[%s2 + $0x8] sm:$0xff] %v101
  // Predicated region
  $region10: #{_forward_tuple.5} parent=0 // pred_check
    _
  $region11: #{_forward_tuple.5} parent=0 // pred_check_branch
    %107 = sbr.rel (0) target = $region13
  $region12: #{_forward_tuple.5} parent=0 // pred_region
    _
  $region13: #{_forward_tuple.5} parent=0 // pred_fallthru
    _
  // Predicated region
  $region14: #{_forward_tuple.5} parent=0 // pred_check
    _
  $region15: #{_forward_tuple.5} parent=0 // pred_check_branch
    %109 = sbr.rel (0) target = $region17
  $region16: #{_forward_tuple.5} parent=0 // pred_region
    _
  $region17: #{_forward_tuple.5} parent=0 // pred_fallthru
    _

</llo_original>
